<compile_context>
chip_gen: v6e
topology: v6e:2x2x1
jax: 0.10.0
libtpu: 0.0.40
codegen_flags: <defaults>
</compile_context>

<pallas_src>
import functools

import jax
import jax.numpy as jnp
from jax.experimental import pallas as pl
from jax.experimental.pallas import tpu as pltpu


# ----------------------------------------------------------------------------
# Fused kernel: 1x1 conv (pointwise matmul) + bias + ReLU + global-avg-pool.
#
#   x_ref:    (1, cin_p, tm)      one NCHW-native row tile of one image
#   w_ref:    (f_p, cin_p)        1x1 conv weight (constant across the grid)
#   b_ref:    (f_p, 1)            conv bias
#   feat_ref: (1, f_p, tm)        features, already in flattened-NCHW layout
#   pool_ref: (1, 1, 1, f_p)      per-(image, hw-chunk) partial pooled sums;
#                                 resident across the hw_inner grid axis
# ----------------------------------------------------------------------------
def stem_pool_kernel(x_ref, w_ref, b_ref, feat_ref, pool_ref):
    ji = pl.program_id(2)  # pool-reduction axis (last, "arbitrary")

    # (f_p, cin_p) @ (cin_p, tm) -> (f_p, tm): MXU, f32 accumulation.  The
    # result is already channel-major, i.e. the flattened-NCHW output layout,
    # so no transpose is needed before the store.
    y = jnp.dot(w_ref[...], x_ref[0], preferred_element_type=jnp.float32)
    y = jnp.maximum(y + b_ref[...].astype(jnp.float32), 0.0)

    feat_ref[0] = y.astype(feat_ref.dtype)

    # Global average pool fused in: accumulate per-chunk partial sums in the
    # resident pooled-output block (lane-dense: f_p on lanes).  The lane
    # reduce is XLU work in an otherwise idle slot.  Normalisation by 1/(H*W)
    # happens in the wrapper after combining the hw_outer partials.
    @pl.when(ji == 0)
    def _init():
        pool_ref[...] = jnp.zeros_like(pool_ref)

    pool_ref[...] += jnp.sum(y, axis=-1).reshape(1, 1, 1, -1)


def _vmem_estimate_bytes(tm, cin_p, f_p, compute_bytes, feat_bytes):
    """Double-buffered VMEM footprint of one grid step + f32 temporaries."""
    x_blk = cin_p * tm * compute_bytes
    w_blk = cin_p * f_p * compute_bytes
    b_blk = f_p * 4
    feat_blk = f_p * tm * feat_bytes
    pool_blk = f_p * 4
    y_tmp = 2 * f_p * tm * 4                 # f32 matmul result + bias/relu temp
    return 2 * (x_blk + w_blk + b_blk + feat_blk + pool_blk) + y_tmp


def _pick_row_tile(hw, cin_p, f_p, compute_bytes, feat_bytes, requested=None,
                   vmem_budget_bytes=20 * 1024 * 1024):
    """Largest lane-dense row tile that divides H*W and fits the VMEM budget.

    tm is the lane dimension of the feature-output block, so it must be a
    multiple of 128 (or equal to the full H*W extent) for unmasked stores.
    The budget is conservative so the same tiling fits v7x's 32 MiB scoped
    VMEM default; v5e/v6e simply have extra headroom.
    """
    def fits(tm):
        return _vmem_estimate_bytes(tm, cin_p, f_p,
                                    compute_bytes, feat_bytes) <= vmem_budget_bytes

    if requested is not None:
        if hw % requested:
            raise ValueError("row_tile must divide H*W")
        if requested % 128 and requested != hw:
            raise ValueError("row_tile must be a multiple of 128 (lane dim of "
                             "the feature store) or equal to H*W")
        if not fits(requested):
            raise ValueError("requested row_tile does not fit the VMEM budget")
        return requested

    for cand in (2048, 1024, 512, 256, 128):
        if hw % cand == 0 and fits(cand):
            return cand
    if fits(hw):
        return hw            # tiny / awkward H*W: one whole-row block per image
    raise ValueError("no row tile fits the VMEM budget")


def _split_hw_tiles(n_tiles, batch):
    """Split the HW tiles into (parallel outer, arbitrary inner) so the
    'parallel' grid extent stays >= 2 even for batch-1 inference (v7x: 2 TCs)."""
    if batch >= 2:
        return 1, n_tiles
    for outer in (2, 4, 3):
        if n_tiles % outer == 0:
            return outer, n_tiles // outer
    return 1, n_tiles


def ranzcr_forward(x, conv_w, conv_b, fc_w, fc_b, *, row_tile=None,
                   compute_dtype=jnp.bfloat16, feat_dtype=None):
    """x: (B, Cin, H, W) NCHW.  Returns (features (B,F,H,W), logits (B,NC) f32).

    compute_dtype: dtype of the stem matmul inputs and feature writeback
                   (bf16 by default: native MXU dtype, halves input DMA and
                   feature HBM writeback).  Accumulation / pool / fc stay f32.
    feat_dtype:    override for the feature-map output dtype (defaults to
                   compute_dtype; pass jnp.float32 to match PyTorch exactly).
    """
    B, Cin, H, W = x.shape
    F = conv_w.shape[0]            # conv_w: (F, Cin)   1x1 conv weight
    NC = fc_w.shape[0]             # fc_w:   (NC, F)    PyTorch Linear layout
    HW = H * W
    feat_dtype = compute_dtype if feat_dtype is None else feat_dtype

    compute_bytes = jnp.dtype(compute_dtype).itemsize
    feat_bytes = jnp.dtype(feat_dtype).itemsize

    # Pad channel dims: Cin -> sublane multiple (8), F -> lane multiple (128).
    cin_p = max(8, ((Cin + 7) // 8) * 8)
    f_p = ((F + 127) // 128) * 128

    tm = _pick_row_tile(HW, cin_p, f_p, compute_bytes, feat_bytes, row_tile)
    n_tiles = HW // tm
    hw_outer, hw_inner = _split_hw_tiles(n_tiles, B)

    # NCHW-native: no input transpose, just a reshape + cheap channel pad.
    x_in = jnp.pad(x.reshape(B, Cin, HW),
                   ((0, 0), (0, cin_p - Cin), (0, 0))).astype(compute_dtype)
    w_in = jnp.pad(conv_w, ((0, f_p - F), (0, cin_p - Cin))).astype(compute_dtype)
    b_in = jnp.pad(conv_b, (0, f_p - F)).reshape(f_p, 1).astype(jnp.float32)

    vmem_est = _vmem_estimate_bytes(tm, cin_p, f_p, compute_bytes, feat_bytes)
    vmem_limit = int(min(max(int(1.5 * vmem_est), 8 * 1024 * 1024),
                         32 * 1024 * 1024))

    cost = pl.CostEstimate(
        flops=int(2 * B * HW * cin_p * f_p + 2 * B * HW * f_p),
        transcendentals=0,
        bytes_accessed=int(B * cin_p * HW * compute_bytes       # x
                           + cin_p * f_p * compute_bytes        # weight
                           + f_p * 4                            # bias
                           + B * f_p * HW * feat_bytes          # features
                           + B * hw_outer * f_p * 4),           # pooled partials
    )

    feat_out, pool_parts = pl.pallas_call(
        stem_pool_kernel,
        out_shape=(jax.ShapeDtypeStruct((B, f_p, HW), feat_dtype),
                   jax.ShapeDtypeStruct((B, hw_outer, 1, f_p), jnp.float32)),
        grid_spec=pltpu.PrefetchScalarGridSpec(
            num_scalar_prefetch=0,
            grid=(B, hw_outer, hw_inner),
            in_specs=[
                pl.BlockSpec((1, cin_p, tm),
                             lambda b, jo, ji: (b, 0, jo * hw_inner + ji)),
                pl.BlockSpec((f_p, cin_p), lambda b, jo, ji: (0, 0)),
                pl.BlockSpec((f_p, 1), lambda b, jo, ji: (0, 0)),
            ],
            out_specs=(
                # TODO(synk): on v5e, sweep pipeline_mode=pl.Buffered(3) on this
                # spec to hide the feature-writeback DMA behind the next tile.
                pl.BlockSpec((1, f_p, tm),
                             lambda b, jo, ji: (b, 0, jo * hw_inner + ji)),
                pl.BlockSpec((1, 1, 1, f_p), lambda b, jo, ji: (b, jo, 0, 0)),
            ),
        ),
        compiler_params=pltpu.CompilerParams(
            dimension_semantics=("parallel", "parallel", "arbitrary"),
            vmem_limit_bytes=vmem_limit),
        cost_estimate=cost,
    )(x_in, w_in, b_in)

    # The kernel already emitted flattened NCHW; only a reshape is needed.
    if F == f_p:
        features = feat_out.reshape(B, F, H, W)
    else:
        # NOTE: this slice re-reads/re-writes the whole feature map in XLA;
        # prefer F % 128 == 0 (or consume the padded map) for big backbones.
        features = feat_out[:, :F, :].reshape(B, F, H, W)

    # Combine per-chunk partial sums + normalise -> AdaptiveAvgPool2d(1).
    pooled = pool_parts.sum(axis=(1, 2)) * (1.0 / HW)          # (B, f_p) f32
    pooled = pooled[:, :F]

    # Tiny fc head in plain XLA — a dedicated pallas_call would be pure overhead.
    logits = pooled @ fc_w.T.astype(jnp.float32) + fc_b.astype(jnp.float32)
    return features, logits


def _reference_forward(x, conv_w, conv_b, fc_w, fc_b):
    """Pure-JAX reference mirroring the PyTorch semantics."""
    B, Cin, H, W = x.shape
    F = conv_w.shape[0]
    x_flat = jnp.transpose(x, (0, 2, 3, 1)).reshape(-1, Cin)
    feat = jnp.maximum(x_flat @ conv_w.T + conv_b, 0.0)
    feat_nchw = jnp.transpose(feat.reshape(B, H, W, F), (0, 3, 1, 2))
    pooled = jnp.mean(feat_nchw, axis=(2, 3))                 # AdaptiveAvgPool2d(1)
    out = pooled @ fc_w.T + fc_b                              # nn.Linear
    return feat_nchw, out


if __name__ == "__main__":
    B, Cin, H, W = 2, 4, 16, 16       # small NCHW input
    F, NC = 128, 8                    # lane-dense feature width, num_classes

    key = jax.random.PRNGKey(0)
    k1, k2, k3, k4, k5 = jax.random.split(key, 5)
    x = jax.random.normal(k1, (B, Cin, H, W), jnp.float32)
    conv_w = 0.1 * jax.random.normal(k2, (F, Cin), jnp.float32)   # 1x1 conv weight
    conv_b = 0.1 * jax.random.normal(k3, (F,), jnp.float32)
    fc_w = 0.1 * jax.random.normal(k4, (NC, F), jnp.float32)      # Linear weight
    fc_b = 0.1 * jax.random.normal(k5, (NC,), jnp.float32)        # Linear bias

    ref_feat, ref_out = _reference_forward(x, conv_w, conv_b, fc_w, fc_b)

    # 1) f32 path, row_tile=128 -> grid (2, 1, 2): exercises the in-kernel
    #    pool accumulator; strict tolerance vs the PyTorch-equivalent reference.
    fwd_f32 = jax.jit(functools.partial(
        ranzcr_forward, row_tile=128, compute_dtype=jnp.float32))
    feat32, out32 = fwd_f32(x, conv_w, conv_b, fc_w, fc_b)
    jax.block_until_ready((feat32, out32))
    assert feat32.shape == (B, F, H, W) and out32.shape == (B, NC)
    assert jnp.allclose(feat32, ref_feat, atol=1e-4, rtol=1e-4)
    assert jnp.allclose(out32, ref_out, atol=1e-4, rtol=1e-4)

    # 2) Default perf path: bf16 inputs + bf16 feature writeback, f32 accum.
    fwd_bf16 = jax.jit(ranzcr_forward)
    feat_bf, out_bf = fwd_bf16(x, conv_w, conv_b, fc_w, fc_b)
    jax.block_until_ready((feat_bf, out_bf))
    assert feat_bf.dtype == jnp.bfloat16 and out_bf.shape == (B, NC)
    assert jnp.allclose(feat_bf.astype(jnp.float32), ref_feat, atol=5e-2, rtol=5e-2)
    assert jnp.allclose(out_bf, ref_out, atol=5e-2, rtol=5e-2)

    # 3) Batch-1 case: HW tiles are split into a 'parallel' outer chunk so the
    #    megacore-parallel grid extent stays >= 2 (grid (1, 2, 1)); per-chunk
    #    partial pools are combined in the wrapper.
    fwd_b1 = jax.jit(functools.partial(
        ranzcr_forward, row_tile=128, compute_dtype=jnp.float32))
    feat1, out1 = fwd_b1(x[:1], conv_w, conv_b, fc_w, fc_b)
    jax.block_until_ready((feat1, out1))
    assert jnp.allclose(feat1, ref_feat[:1], atol=1e-4, rtol=1e-4)
    assert jnp.allclose(out1, ref_out[:1], atol=1e-4, rtol=1e-4)

    print("KERNEL_OK")
</pallas_src>

<mosaic_0001>
module attributes {stable_mosaic.version = 11 : i64} {
  func.func @stem_pool_kernel(%arg0: i32, %arg1: i32, %arg2: i32, %arg3: memref<1x8x128xf32, #tpu.memory_space<vmem>>, %arg4: memref<128x8xf32, #tpu.memory_space<vmem>>, %arg5: memref<128x1xf32, #tpu.memory_space<vmem>>, %arg6: memref<1x128x128xf32, #tpu.memory_space<vmem>>, %arg7: memref<1x1x1x128xf32, #tpu.memory_space<vmem>>) attributes {dimension_semantics = [#tpu.dimension_semantics<parallel>, #tpu.dimension_semantics<parallel>, #tpu.dimension_semantics<arbitrary>], iteration_bounds = array<i64: 2, 1, 2>, scalar_prefetch = 0 : i64, scratch_operands = 0 : i64, tpu.core_type = #tpu.core_type<tc>, window_params = [{transform_indices = @transform_0, window_bounds = array<i64: 1, 8, 128>}, {pipeline_mode = #tpu.pipeline_mode<synchronous>, transform_indices = @transform_1, window_bounds = array<i64: 128, 8>}, {pipeline_mode = #tpu.pipeline_mode<synchronous>, transform_indices = @transform_2, window_bounds = array<i64: 128, 1>}, {transform_indices = @transform_3, window_bounds = array<i64: 1, 128, 128>}, {transform_indices = @transform_4, window_bounds = array<i64: 1, 1, 1, 128>}]} {
    %c0 = arith.constant 0 : index
    %c0_0 = arith.constant 0 : index
    %0 = vector.load %arg4[%c0, %c0_0] : memref<128x8xf32, #tpu.memory_space<vmem>>, vector<128x8xf32>
    %c0_1 = arith.constant 0 : index
    %c0_2 = arith.constant 0 : index
    %c0_3 = arith.constant 0 : index
    %1 = vector.load %arg3[%c0_1, %c0_2, %c0_3] : memref<1x8x128xf32, #tpu.memory_space<vmem>>, vector<1x8x128xf32>
    %2 = vector.shape_cast %1 : vector<1x8x128xf32> to vector<8x128xf32>
    %cst = arith.constant dense<0.000000e+00> : vector<128x128xf32>
    %3 = tpu.matmul %0, %2, %cst {dimension_numbers = #tpu.dot_dimension_numbers<[1], [0], [0], [1], [0, 0, 1, 1], [], []>} : vector<128x8xf32>, vector<8x128xf32>, vector<128x128xf32> -> vector<128x128xf32>
    %c0_4 = arith.constant 0 : index
    %c0_5 = arith.constant 0 : index
    %4 = vector.load %arg5[%c0_4, %c0_5] : memref<128x1xf32, #tpu.memory_space<vmem>>, vector<128x1xf32>
    %5 = vector.broadcast %4 : vector<128x1xf32> to vector<128x128xf32>
    %6 = arith.addf %3, %5 : vector<128x128xf32>
    %cst_6 = arith.constant 0.000000e+00 : f32
    %7 = vector.broadcast %cst_6 : f32 to vector<128x128xf32>
    %8 = arith.maximumf %6, %7 : vector<128x128xf32>
    %c0_7 = arith.constant 0 : index
    %c0_8 = arith.constant 0 : index
    %c0_9 = arith.constant 0 : index
    %9 = vector.load %arg6[%c0_7, %c0_8, %c0_9] : memref<1x128x128xf32, #tpu.memory_space<vmem>>, vector<1x128x128xf32>
    %10 = vector.shape_cast %9 : vector<1x128x128xf32> to vector<128x128xf32>
    %11 = vector.shape_cast %8 : vector<128x128xf32> to vector<1x128x128xf32>
    tpu.vector_store %arg6[%c0_7, %c0_8, %c0_9], %11 {strides = array<i32>} : memref<1x128x128xf32, #tpu.memory_space<vmem>>, vector<1x128x128xf32>,
    %c0_i32 = arith.constant 0 : i32
    %12 = arith.cmpi eq, %arg2, %c0_i32 : i32
    %13 = arith.extui %12 : i1 to i32
    %c0_i32_10 = arith.constant 0 : i32
    %14 = arith.cmpi ne, %13, %c0_i32_10 : i32
    scf.if %14 {
      %cst_20 = arith.constant 0.000000e+00 : f32
      %20 = vector.broadcast %cst_20 : f32 to vector<1x1x1x128xf32>
      %c0_21 = arith.constant 0 : index
      %c0_22 = arith.constant 0 : index
      %c0_23 = arith.constant 0 : index
      %c0_24 = arith.constant 0 : index
      %21 = vector.load %arg7[%c0_21, %c0_22, %c0_23, %c0_24] : memref<1x1x1x128xf32, #tpu.memory_space<vmem>>, vector<1x1x1x128xf32>
      tpu.vector_store %arg7[%c0_21, %c0_22, %c0_23, %c0_24], %20 {strides = array<i32>} : memref<1x1x1x128xf32, #tpu.memory_space<vmem>>, vector<1x1x1x128xf32>,
    } else {
    }
    %c0_11 = arith.constant 0 : index
    %c0_12 = arith.constant 0 : index
    %c0_13 = arith.constant 0 : index
    %c0_14 = arith.constant 0 : index
    %15 = vector.load %arg7[%c0_11, %c0_12, %c0_13, %c0_14] : memref<1x1x1x128xf32, #tpu.memory_space<vmem>>, vector<1x1x1x128xf32>
    %cst_15 = arith.constant dense<0.000000e+00> : vector<128xf32>
    %16 = vector.multi_reduction <add>, %8, %cst_15 [1] : vector<128x128xf32> to vector<128xf32>
    %17 = vector.shape_cast %16 : vector<128xf32> to vector<1x1x1x128xf32>
    %18 = arith.addf %15, %17 : vector<1x1x1x128xf32>
    %c0_16 = arith.constant 0 : index
    %c0_17 = arith.constant 0 : index
    %c0_18 = arith.constant 0 : index
    %c0_19 = arith.constant 0 : index
    %19 = vector.load %arg7[%c0_16, %c0_17, %c0_18, %c0_19] : memref<1x1x1x128xf32, #tpu.memory_space<vmem>>, vector<1x1x1x128xf32>
    tpu.vector_store %arg7[%c0_16, %c0_17, %c0_18, %c0_19], %18 {strides = array<i32>} : memref<1x1x1x128xf32, #tpu.memory_space<vmem>>, vector<1x1x1x128xf32>,
    return
  }
  func.func @transform_0(%arg0: i32, %arg1: i32, %arg2: i32) -> (i32, i32, i32) {
    %c2_i32 = arith.constant 2 : i32
    %0 = arith.muli %arg1, %c2_i32 : i32
    %1 = arith.addi %0, %arg2 : i32
    %c0_i32 = arith.constant 0 : i32
    %c0_i32_0 = arith.constant 0 : i32
    return %arg0, %c0_i32, %1 : i32, i32, i32
  }
  func.func @transform_1(%arg0: i32, %arg1: i32, %arg2: i32) -> (i32, i32) {
    %c0_i32 = arith.constant 0 : i32
    %c0_i32_0 = arith.constant 0 : i32
    %c0_i32_1 = arith.constant 0 : i32
    return %c0_i32, %c0_i32_0 : i32, i32
  }
  func.func @transform_2(%arg0: i32, %arg1: i32, %arg2: i32) -> (i32, i32) {
    %c0_i32 = arith.constant 0 : i32
    %c0_i32_0 = arith.constant 0 : i32
    %c0_i32_1 = arith.constant 0 : i32
    return %c0_i32, %c0_i32_0 : i32, i32
  }
  func.func @transform_3(%arg0: i32, %arg1: i32, %arg2: i32) -> (i32, i32, i32) {
    %c2_i32 = arith.constant 2 : i32
    %0 = arith.muli %arg1, %c2_i32 : i32
    %1 = arith.addi %0, %arg2 : i32
    %c0_i32 = arith.constant 0 : i32
    %c0_i32_0 = arith.constant 0 : i32
    return %arg0, %c0_i32, %1 : i32, i32, i32
  }
  func.func @transform_4(%arg0: i32, %arg1: i32, %arg2: i32) -> (i32, i32, i32, i32) {
    %c0_i32 = arith.constant 0 : i32
    %c0_i32_0 = arith.constant 0 : i32
    %c0_i32_1 = arith.constant 0 : i32
    return %arg0, %arg1, %c0_i32, %c0_i32_0 : i32, i32, i32, i32
  }
}

</mosaic_0001>

<llo_original>
// kernel: ranzcr_forward.1
$region0: #{ranzcr_forward.1}
  #allocation0 [shape = 'u32[]', space=smem, size = 0x4, offset = 0x4, fixed_abs, tag = 'smem constant byte address 0x4 - core index']
  #allocation1 [shape = 'u32[144,128]{1,0:T(1,128)}', space=vmem, size = 0x12000, scoped, tag = 'internal scratch']
  %s0 = inlined_call_operand.vmem [shape: f32[2,8,256], index: 0, kind: input, shape index: {}]
  %s1 = inlined_call_operand.vmem [shape: f32[128,8], index: 1, kind: input, shape index: {}]
  %s2 = inlined_call_operand.vmem [shape: f32[128,1], index: 2, kind: input, shape index: {}]
  %s3 = inlined_call_operand.vmem [shape: f32[2,128,256], index: 3, kind: output, shape index: {0}]
  %s4 = inlined_call_operand.vmem [shape: f32[2,1,1,128], index: 4, kind: output, shape index: {1}]
  %5 = xla_tuple %s3, %s4
  %s6 = sld [smem:[#allocation0]]
  $region91: #{ranzcr_forward.1} parent=0
    _
  %s8 = ssub.s32 1, %s6
  %s9 = scalar_select 0, %s8, %s6
  $region1: #{ranzcr_forward.1} parent=0
    #allocation2 [shape = 'u8[131072]{0}', space=vmem, size = 0x20000, scoped, tag = 'output window, operand 0']
    loop: start=0, step=1, limit=6
    $region2: #{ranzcr_forward.1} parent=1 // loop_pre_header
      _
    $region3: #{ranzcr_forward.1} parent=1 // loop_header
      %s11 = sphi 0, %s15
      %p12 = scmp.ge.s32.totalorder %s11, 6
      %s18 = sphi 0, %s37
      %s19 = sphi 0, %s33
      %s20 = sphi 0, %s29
      %s21 = sphi 0, %s18
      %s22 = sphi 0, %s19
      %s23 = sphi 0, %s20
      %s24 = sphi 0, %s21
      %s25 = sphi 0, %s22
      %s26 = sphi 0, %s23
      %s46 = sphi 0, %s48
      %s49 = sphi 0, %s46
      %s50 = sphi 0, %s49
      %s66 = sphi 0, %s50
      %s70 = sphi 0, %s70
      %s72 = sphi 0, %s70
      %s73 = sphi 0, %s72
      %s87 = sphi 0, %s73
      %s91 = sphi 0, %s91
      %s93 = sphi 0, %s91
      %s94 = sphi 0, %s93
      %s108 = sphi 0, %s94
      %s120 = sphi 0, %s122
      %s123 = sphi 0, %s120
      %s124 = sphi 0, %s123
      %s140 = sphi 0, %s124
      %s148 = sphi 0, %s150
      %s151 = sphi 0, %s148
      %s152 = sphi 0, %s151
      %s168 = sphi 0, %s152
    $region4: #{ranzcr_forward.1} parent=1 // loop_header_branch
      %14 = sbr.rel (%p12) target = $region8
    $region5: #{ranzcr_forward.1} parent=1 // loop_body
      %s16 = ssub.s32 %s11, 1
      %s17 = ssub.s32 %s11, 2
      %s27 = sadd.s32 1, %s20
      %p28 = scmp.ge.s32.totalorder %s27, 2
      %s29 = scalar_select %p28, 0, %s27
      %s30 = sadd.s32 1, %s19
      %s31 = scalar_select %p28, %s30, %s19
      %p32 = scmp.ge.s32.totalorder %s31, 1
      %s33 = scalar_select %p32, 0, %s31
      %s34 = sadd.s32 1, %s18
      %s35 = scalar_select %p32, %s34, %s18
      %p36 = scmp.ge.s32.totalorder %s35, 2
      %s37 = scalar_select %p36, 0, %s35
      %s38 = smul.u32 %s19, 2
      %s39 = sadd.s32 %s38, %s20
      %s40 = smul.u32 %s33, 2
      %s41 = sadd.s32 %s40, %s29
      %s42 = ssub.s32 %s18, %s37
      %s43 = ssub.s32 %s39, %s41
      %s44 = sor.u32 %s42, %s43
      %p45 = scmp.eq.s32.totalorder %s44, 0
      %s47 = sadd.s32 %s46, 1
      %s48 = scalar_select %p45, %s46, %s47
      %p51 = pneg %p45
      %p52 = scmp.eq.s32.totalorder %s11, 3
      %p53 = por %p51, %p52
      %p54 = scmp.ne.s32.totalorder %s46, %s49
      %p55 = scmp.eq.s32.totalorder %s11, 0
      %p56 = por %p54, %p55
      %p57 = scmp.ne.s32.totalorder %s46, %s49
      %p58 = scmp.eq.s32.totalorder %s16, 3
      %p59 = por %p57, %p58
      %p60 = scmp.ne.s32.totalorder %s49, %s50
      %p61 = scmp.eq.s32.totalorder %s16, 0
      %p62 = por %p60, %p61
      %p63 = scmp.ne.s32.totalorder %s49, %s50
      %p64 = scmp.eq.s32.totalorder %s17, 3
      %p65 = por %p63, %p64
      %p67 = scmp.ne.s32.totalorder %s50, %s66
      %p68 = scmp.eq.s32.totalorder %s17, 0
      %p69 = por %p67, %p68
      %s71 = sadd.s32 %s70, 1
      %p74 = scmp.eq.s32.totalorder %s11, 3
      %p75 = scmp.ne.s32.totalorder %s70, %s72
      %p76 = scmp.eq.s32.totalorder %s11, 0
      %p77 = por %p75, %p76
      %p78 = scmp.ne.s32.totalorder %s70, %s72
      %p79 = scmp.eq.s32.totalorder %s16, 3
      %p80 = por %p78, %p79
      %p81 = scmp.ne.s32.totalorder %s72, %s73
      %p82 = scmp.eq.s32.totalorder %s16, 0
      %p83 = por %p81, %p82
      %p84 = scmp.ne.s32.totalorder %s72, %s73
      %p85 = scmp.eq.s32.totalorder %s17, 3
      %p86 = por %p84, %p85
      %p88 = scmp.ne.s32.totalorder %s73, %s87
      %p89 = scmp.eq.s32.totalorder %s17, 0
      %p90 = por %p88, %p89
      %s92 = sadd.s32 %s91, 1
      %p95 = scmp.eq.s32.totalorder %s11, 3
      %p96 = scmp.ne.s32.totalorder %s91, %s93
      %p97 = scmp.eq.s32.totalorder %s11, 0
      %p98 = por %p96, %p97
      %p99 = scmp.ne.s32.totalorder %s91, %s93
      %p100 = scmp.eq.s32.totalorder %s16, 3
      %p101 = por %p99, %p100
      %p102 = scmp.ne.s32.totalorder %s93, %s94
      %p103 = scmp.eq.s32.totalorder %s16, 0
      %p104 = por %p102, %p103
      %p105 = scmp.ne.s32.totalorder %s93, %s94
      %p106 = scmp.eq.s32.totalorder %s17, 3
      %p107 = por %p105, %p106
      %p109 = scmp.ne.s32.totalorder %s94, %s108
      %p110 = scmp.eq.s32.totalorder %s17, 0
      %p111 = por %p109, %p110
      %s112 = smul.u32 %s19, 2
      %s113 = sadd.s32 %s112, %s20
      %s114 = smul.u32 %s33, 2
      %s115 = sadd.s32 %s114, %s29
      %s116 = ssub.s32 %s18, %s37
      %s117 = ssub.s32 %s113, %s115
      %s118 = sor.u32 %s116, %s117
      %p119 = scmp.eq.s32.totalorder %s118, 0
      %s121 = sadd.s32 %s120, 1
      %s122 = scalar_select %p119, %s120, %s121
      %p125 = pneg %p119
      %p126 = scmp.eq.s32.totalorder %s11, 3
      %p127 = por %p125, %p126
      %p128 = scmp.ne.s32.totalorder %s120, %s123
      %p129 = scmp.eq.s32.totalorder %s11, 0
      %p130 = por %p128, %p129
      %p131 = scmp.ne.s32.totalorder %s120, %s123
      %p132 = scmp.eq.s32.totalorder %s16, 3
      %p133 = por %p131, %p132
      %p134 = scmp.ne.s32.totalorder %s123, %s124
      %p135 = scmp.eq.s32.totalorder %s16, 0
      %p136 = por %p134, %p135
      %p137 = scmp.ne.s32.totalorder %s123, %s124
      %p138 = scmp.eq.s32.totalorder %s17, 3
      %p139 = por %p137, %p138
      %p141 = scmp.ne.s32.totalorder %s124, %s140
      %p142 = scmp.eq.s32.totalorder %s17, 0
      %p143 = por %p141, %p142
      %s144 = ssub.s32 %s18, %s37
      %s145 = ssub.s32 %s19, %s33
      %s146 = sor.u32 %s144, %s145
      %p147 = scmp.eq.s32.totalorder %s146, 0
      %s149 = sadd.s32 %s148, 1
      %s150 = scalar_select %p147, %s148, %s149
      %p153 = pneg %p147
      %p154 = scmp.eq.s32.totalorder %s11, 3
      %p155 = por %p153, %p154
      %p156 = scmp.ne.s32.totalorder %s148, %s151
      %p157 = scmp.eq.s32.totalorder %s11, 0
      %p158 = por %p156, %p157
      %p159 = scmp.ne.s32.totalorder %s148, %s151
      %p160 = scmp.eq.s32.totalorder %s16, 3
      %p161 = por %p159, %p160
      %p162 = scmp.ne.s32.totalorder %s151, %s152
      %p163 = scmp.eq.s32.totalorder %s16, 0
      %p164 = por %p162, %p163
      %p165 = scmp.ne.s32.totalorder %s151, %s152
      %p166 = scmp.eq.s32.totalorder %s17, 3
      %p167 = por %p165, %p166
      %p169 = scmp.ne.s32.totalorder %s152, %s168
      %p170 = scmp.eq.s32.totalorder %s17, 0
      %p171 = por %p169, %p170
      %p172 = scmp.le.s32.totalorder 1, %s11
      %p173 = scmp.lt.s32.totalorder %s11, 5
      %p174 = pnand %p172, %p173
      %p175 = pneg %p174
      // Predicated region
      $region9: #{ranzcr_forward.1} parent=5 // pred_check
        _
      $region10: #{ranzcr_forward.1} parent=5 // pred_check_branch
        %177 = sbr.rel (%p174) target = $region12
      $region11: #{ranzcr_forward.1} parent=5 // pred_region
        %s178 = ssub.s32 %s11, 1
        // Predicated region
        $region13: #{ranzcr_forward.1} parent=11 // pred_check
          %p179 = pneg %p83
        $region14: #{ranzcr_forward.1} parent=11 // pred_check_branch
          %181 = sbr.rel (%p179) target = $region16
        $region15: #{ranzcr_forward.1} parent=11 // pred_region
          _
        $region16: #{ranzcr_forward.1} parent=11 // pred_fallthru
          _
        // Predicated region
        $region17: #{ranzcr_forward.1} parent=11 // pred_check
          %p182 = pneg %p104
        $region18: #{ranzcr_forward.1} parent=11 // pred_check_branch
          %184 = sbr.rel (%p182) target = $region20
        $region19: #{ranzcr_forward.1} parent=11 // pred_region
          _
        $region20: #{ranzcr_forward.1} parent=11 // pred_fallthru
          _
      $region12: #{ranzcr_forward.1} parent=5 // pred_fallthru
        _
      %p185 = scmp.lt.s32.totalorder %s11, 4
      // Predicated region
      $region21: #{ranzcr_forward.1} parent=5 // pred_check
        %p186 = pneg %p185
      $region22: #{ranzcr_forward.1} parent=5 // pred_check_branch
        %188 = sbr.rel (%p186) target = $region24
      $region23: #{ranzcr_forward.1} parent=5 // pred_region
        // Predicated region
        $region25: #{ranzcr_forward.1} parent=23 // pred_check
          %p189 = pneg %p56
        $region26: #{ranzcr_forward.1} parent=23 // pred_check_branch
          %191 = sbr.rel (%p189) target = $region28
        $region27: #{ranzcr_forward.1} parent=23 // pred_region
          %s192 = smul.u32 %s19, 2
          %s193 = sadd.s32 %s192, %s20
          %p194 = scmp.lt.s32.totalorder %s18, 1
          %s195 = scalar_select %p194, %s18, 1
          %p196 = scmp.lt.s32.totalorder %s193, 1
          %s197 = scalar_select %p196, %s193, 1
          %s198 = smul.addr %s195, 2
          %s199 = sadd.s32 %s197, %s198
          %s200 = smul.addr %s199, 8
          %s201 = scalar_lea.vmem %s0, %s200
          %s202 = smul.u32 %s19, 2
          %s203 = sadd.s32 %s202, %s20
        $region28: #{ranzcr_forward.1} parent=23 // pred_fallthru
          _
      $region24: #{ranzcr_forward.1} parent=5 // pred_fallthru
        _
      %p204 = scmp.le.s32.totalorder 1, %s11
      %p205 = scmp.lt.s32.totalorder %s11, 5
      %p206 = pnand %p204, %p205
      %p207 = pneg %p206
      // Predicated region
      $region29: #{ranzcr_forward.1} parent=5 // pred_check
        _
      $region30: #{ranzcr_forward.1} parent=5 // pred_check_branch
        %209 = sbr.rel (%p206) target = $region32
      $region31: #{ranzcr_forward.1} parent=5 // pred_region
        %s210 = ssub.s32 %s11, 1
        %s211 = smul.u32 %s22, 2
        %s212 = sadd.s32 %s211, %s23
        %p213 = scmp.lt.s32.totalorder %s21, 1
        %s214 = scalar_select %p213, %s21, 1
        %p215 = scmp.lt.s32.totalorder %s212, 1
        %s216 = scalar_select %p215, %s212, 1
        %s217 = smul.addr %s214, 2
        %s218 = sadd.s32 %s216, %s217
        %s219 = smul.addr %s218, 8
        %s220 = scalar_lea.vmem %s0, %s219
        %p221 = pneg %p62
        %p222 = pneg %p59
        %p223 = pneg %p83
        %p224 = pneg %p80
        %p225 = pneg %p104
        %p226 = pneg %p101
        %p227 = pneg %p136
        %p228 = pneg %p133
        %s229 = sand.u32 %s123, 1
        %s230 = sand.u32 %s123, 1
        %s231 = smul.addr %s230, 128
        %s232 = scalar_lea.vmem [#allocation2], %s231
        %p233 = pneg %p164
        %p234 = pneg %p161
        %p235 = scmp.lt.s32.totalorder %s21, 1
        %s236 = scalar_select %p235, %s21, 1
        %p237 = scmp.lt.s32.totalorder %s22, 0
        %s238 = scalar_select %p237, %s22, 0
        %s239 = sadd.s32 %s238, %s236
        %s240 = scalar_lea.vmem %s4, %s239
        %s241 = smul.u32 %s22, 2
        %s242 = sadd.s32 %s241, %s23
        %p243 = scmp.lt.s32.totalorder %s21, 1
        %s244 = scalar_select %p243, %s21, 1
        %p245 = scmp.lt.s32.totalorder %s242, 1
        %s246 = scalar_select %p245, %s242, 1
        %s247 = smul.addr %s244, 2
        %s248 = sadd.s32 %s246, %s247
        %s249 = smul.addr %s248, 8
        %s250 = scalar_lea.vmem %s0, %s249
        %s251 = smul.u32 %s22, 2
        %s252 = sadd.s32 %s251, %s23
        %s253 = smul.u32 %s22, 2
        %s254 = sadd.s32 %s253, %s23
        %p255 = scmp.lt.s32.totalorder %s21, 1
        %s256 = scalar_select %p255, %s21, 1
        %p257 = scmp.lt.s32.totalorder %s22, 0
        %s258 = scalar_select %p257, %s22, 0
        %s259 = sadd.s32 %s258, %s256
        %s260 = scalar_lea.vmem %s4, %s259
        %v261 = vld [vmem:[%s1] sm:$0xff]
        %v262 = vld [vmem:[%s1 + $0x8] sm:$0xff]
        %v263 = vld [vmem:[%s1 + $0x10] sm:$0xff]
        %v264 = vld [vmem:[%s1 + $0x18] sm:$0xff]
        %v265 = vld [vmem:[%s1 + $0x20] sm:$0xff]
        %v266 = vld [vmem:[%s1 + $0x28] sm:$0xff]
        %v267 = vld [vmem:[%s1 + $0x30] sm:$0xff]
        %v268 = vld [vmem:[%s1 + $0x38] sm:$0xff]
        %v269 = vld [vmem:[%s1 + $0x40] sm:$0xff]
        %v270 = vld [vmem:[%s1 + $0x48] sm:$0xff]
        %v271 = vld [vmem:[%s1 + $0x50] sm:$0xff]
        %v272 = vld [vmem:[%s1 + $0x58] sm:$0xff]
        %v273 = vld [vmem:[%s1 + $0x60] sm:$0xff]
        %v274 = vld [vmem:[%s1 + $0x68] sm:$0xff]
        %v275 = vld [vmem:[%s1 + $0x70] sm:$0xff]
        %v276 = vld [vmem:[%s1 + $0x78] sm:$0xff]
        %v277 = vld [vmem:[%s250] sm:$0xff]
        %v278 = vld [vmem:[%s2] sm:$0xff]
        %v279 = vld [vmem:[%s2 + $0x8] sm:$0xff]
        %v280 = vld [vmem:[%s2 + $0x10] sm:$0xff]
        %v281 = vld [vmem:[%s2 + $0x18] sm:$0xff]
        %v282 = vld [vmem:[%s2 + $0x20] sm:$0xff]
        %v283 = vld [vmem:[%s2 + $0x28] sm:$0xff]
        %v284 = vld [vmem:[%s2 + $0x30] sm:$0xff]
        %v285 = vld [vmem:[%s2 + $0x38] sm:$0xff]
        %v286 = vld [vmem:[%s2 + $0x40] sm:$0xff]
        %v287 = vld [vmem:[%s2 + $0x48] sm:$0xff]
        %v288 = vld [vmem:[%s2 + $0x50] sm:$0xff]
        %v289 = vld [vmem:[%s2 + $0x58] sm:$0xff]
        %v290 = vld [vmem:[%s2 + $0x60] sm:$0xff]
        %v291 = vld [vmem:[%s2 + $0x68] sm:$0xff]
        %v292 = vld [vmem:[%s2 + $0x70] sm:$0xff]
        %v293 = vld [vmem:[%s2 + $0x78] sm:$0xff]
        %295 = vset.pattern.permute.xlu0 0
        %296 = vperm.xlu0 %295, %v278
        %v297 = vpop.permute.xlu0 %296
        %300 = vset.pattern.permute.xlu0 0
        %301 = vperm.xlu0 %300, %v279
        %v302 = vpop.permute.xlu0 %301
        %305 = vset.pattern.permute.xlu0 0
        %306 = vperm.xlu0 %305, %v280
        %v307 = vpop.permute.xlu0 %306
        %310 = vset.pattern.permute.xlu0 0
        %311 = vperm.xlu0 %310, %v281
        %v312 = vpop.permute.xlu0 %311
        %315 = vset.pattern.permute.xlu0 0
        %316 = vperm.xlu0 %315, %v282
        %v317 = vpop.permute.xlu0 %316
        %320 = vset.pattern.permute.xlu0 0
        %321 = vperm.xlu0 %320, %v283
        %v322 = vpop.permute.xlu0 %321
        %325 = vset.pattern.permute.xlu0 0
        %326 = vperm.xlu0 %325, %v284
        %v327 = vpop.permute.xlu0 %326
        %330 = vset.pattern.permute.xlu0 0
        %331 = vperm.xlu0 %330, %v285
        %v332 = vpop.permute.xlu0 %331
        %335 = vset.pattern.permute.xlu0 0
        %336 = vperm.xlu0 %335, %v286
        %v337 = vpop.permute.xlu0 %336
        %340 = vset.pattern.permute.xlu0 0
        %341 = vperm.xlu0 %340, %v287
        %v342 = vpop.permute.xlu0 %341
        %345 = vset.pattern.permute.xlu0 0
        %346 = vperm.xlu0 %345, %v288
        %v347 = vpop.permute.xlu0 %346
        %350 = vset.pattern.permute.xlu0 0
        %351 = vperm.xlu0 %350, %v289
        %v352 = vpop.permute.xlu0 %351
        %355 = vset.pattern.permute.xlu0 0
        %356 = vperm.xlu0 %355, %v290
        %v357 = vpop.permute.xlu0 %356
        %360 = vset.pattern.permute.xlu0 0
        %361 = vperm.xlu0 %360, %v291
        %v362 = vpop.permute.xlu0 %361
        %365 = vset.pattern.permute.xlu0 0
        %366 = vperm.xlu0 %365, %v292
        %v367 = vpop.permute.xlu0 %366
        %370 = vset.pattern.permute.xlu0 0
        %371 = vperm.xlu0 %370, %v293
        %v372 = vpop.permute.xlu0 %371
        %vm374 = vcmask 64512
        %v376 = vsel %vm374, %v261, 0
        %v379 = vsel %vm374, %v262, 0
        %v382 = vsel %vm374, %v263, 0
        %v385 = vsel %vm374, %v264, 0
        %v388 = vsel %vm374, %v265, 0
        %v391 = vsel %vm374, %v266, 0
        %v394 = vsel %vm374, %v267, 0
        %v397 = vsel %vm374, %v268, 0
        %v400 = vsel %vm374, %v269, 0
        %v403 = vsel %vm374, %v270, 0
        %v406 = vsel %vm374, %v271, 0
        %v409 = vsel %vm374, %v272, 0
        %v412 = vsel %vm374, %v273, 0
        %v415 = vsel %vm374, %v274, 0
        %v418 = vsel %vm374, %v275, 0
        %v421 = vsel %vm374, %v276, 0
        %423 = vmatprep.subr.mxu0 0.0
        %424 = vmatpush1.msra.mxu0 0.0
        %425 = vmatprep.subr.mxu0 0.0
        %426 = vmatpush1.msra.mxu0 0.0
        %427 = vmatprep.subr.mxu0 0.0
        %428 = vmatpush1.msra.mxu0 0.0
        %429 = vmatprep.subr.mxu0 0.0
        %430 = vmatpush1.msra.mxu0 0.0
        %431 = vmatprep.subr.mxu0 0.0
        %432 = vmatpush1.msra.mxu0 0.0
        %433 = vmatprep.subr.mxu0 0.0
        %434 = vmatpush1.msra.mxu0 0.0
        %435 = vmatprep.subr.mxu0 0.0
        %436 = vmatpush1.msra.mxu0 0.0
        %437 = vmatprep.subr.mxu0 0.0
        %438 = vmatpush1.msra.mxu0 0.0
        %439 = vmatprep.subr.mxu0 0.0
        %440 = vmatpush1.msra.mxu0 0.0
        %441 = vmatprep.subr.mxu0 0.0
        %442 = vmatpush1.msra.mxu0 0.0
        %443 = vmatprep.subr.mxu0 0.0
        %444 = vmatpush1.msra.mxu0 0.0
        %445 = vmatprep.subr.mxu0 0.0
        %446 = vmatpush1.msra.mxu0 0.0
        %447 = vmatprep.subr.mxu0 0.0
        %448 = vmatpush1.msra.mxu0 0.0
        %449 = vmatprep.subr.mxu0 0.0
        %450 = vmatpush1.msra.mxu0 0.0
        %451 = vmatprep.subr.mxu0 0.0
        %452 = vmatpush1.msra.mxu0 0.0
        %453 = vmatprep.subr.mxu0 0.0
        %454 = vmatpush1.msra.mxu0 %v277
        %455 = vmatprep.subr.mxu0 0.0
        %456 = vmatpush2.msra.mxu0 0.0
        %457 = vmatprep.subr.mxu0 0.0
        %458 = vmatpush2.msra.mxu0 0.0
        %459 = vmatprep.subr.mxu0 0.0
        %460 = vmatpush2.msra.mxu0 0.0
        %461 = vmatprep.subr.mxu0 0.0
        %462 = vmatpush2.msra.mxu0 0.0
        %463 = vmatprep.subr.mxu0 0.0
        %464 = vmatpush2.msra.mxu0 0.0
        %465 = vmatprep.subr.mxu0 0.0
        %466 = vmatpush2.msra.mxu0 0.0
        %467 = vmatprep.subr.mxu0 0.0
        %468 = vmatpush2.msra.mxu0 0.0
        %469 = vmatprep.subr.mxu0 0.0
        %470 = vmatpush2.msra.mxu0 0.0
        %471 = vmatprep.subr.mxu0 0.0
        %472 = vmatpush2.msra.mxu0 0.0
        %473 = vmatprep.subr.mxu0 0.0
        %474 = vmatpush2.msra.mxu0 0.0
        %475 = vmatprep.subr.mxu0 0.0
        %476 = vmatpush2.msra.mxu0 0.0
        %477 = vmatprep.subr.mxu0 0.0
        %478 = vmatpush2.msra.mxu0 0.0
        %479 = vmatprep.subr.mxu0 0.0
        %480 = vmatpush2.msra.mxu0 0.0
        %481 = vmatprep.subr.mxu0 0.0
        %482 = vmatpush2.msra.mxu0 0.0
        %483 = vmatprep.subr.mxu0 0.0
        %484 = vmatpush2.msra.mxu0 0.0
        %485 = vmatprep.subr.mxu0 0.0
        %486 = vmatpush2.msra.mxu0 0.0
        %487 = vmatprep.mubr.f32.mxu0 0.0
        %488 = vmatmul.mubr.f32.gmra.mxu0 %v376
        %v489 = vpop.f32.mrf.mxu0
        %v490 = vadd.f32 %v297, %v489
        %v491 = vpop.f32.mrf.mxu0
        %492 = vmatprep.mubr.f32.mxu0 0.0
        %493 = vmatmul.mubr.f32.gmra.mxu0 %v379
        %v494 = vpop.f32.mrf.mxu0
        %v495 = vadd.f32 %v302, %v494
        %v496 = vpop.f32.mrf.mxu0
        %497 = vmatprep.mubr.f32.mxu0 0.0
        %498 = vmatmul.mubr.f32.gmra.mxu0 %v382
        %v499 = vpop.f32.mrf.mxu0
        %v500 = vadd.f32 %v307, %v499
        %v501 = vpop.f32.mrf.mxu0
        %502 = vmatprep.mubr.f32.mxu0 0.0
        %503 = vmatmul.mubr.f32.gmra.mxu0 %v385
        %v504 = vpop.f32.mrf.mxu0
        %v505 = vadd.f32 %v312, %v504
        %v506 = vpop.f32.mrf.mxu0
        %507 = vmatprep.mubr.f32.mxu0 0.0
        %508 = vmatmul.mubr.f32.gmra.mxu0 %v388
        %v509 = vpop.f32.mrf.mxu0
        %v510 = vadd.f32 %v317, %v509
        %v511 = vpop.f32.mrf.mxu0
        %512 = vmatprep.mubr.f32.mxu0 0.0
        %513 = vmatmul.mubr.f32.gmra.mxu0 %v391
        %v514 = vpop.f32.mrf.mxu0
        %v515 = vadd.f32 %v322, %v514
        %v516 = vpop.f32.mrf.mxu0
        %517 = vmatprep.mubr.f32.mxu0 0.0
        %518 = vmatmul.mubr.f32.gmra.mxu0 %v394
        %v519 = vpop.f32.mrf.mxu0
        %v520 = vadd.f32 %v327, %v519
        %v521 = vpop.f32.mrf.mxu0
        %522 = vmatprep.mubr.f32.mxu0 0.0
        %523 = vmatmul.mubr.f32.gmra.mxu0 %v397
        %v524 = vpop.f32.mrf.mxu0
        %v525 = vadd.f32 %v332, %v524
        %v526 = vpop.f32.mrf.mxu0
        %527 = vmatprep.mubr.f32.mxu0 0.0
        %528 = vmatmul.mubr.f32.gmra.mxu0 %v400
        %v529 = vpop.f32.mrf.mxu0
        %v530 = vadd.f32 %v337, %v529
        %v531 = vpop.f32.mrf.mxu0
        %532 = vmatprep.mubr.f32.mxu0 0.0
        %533 = vmatmul.mubr.f32.gmra.mxu0 %v403
        %v534 = vpop.f32.mrf.mxu0
        %v535 = vadd.f32 %v342, %v534
        %v536 = vpop.f32.mrf.mxu0
        %537 = vmatprep.mubr.f32.mxu0 0.0
        %538 = vmatmul.mubr.f32.gmra.mxu0 %v406
        %v539 = vpop.f32.mrf.mxu0
        %v540 = vadd.f32 %v347, %v539
        %v541 = vpop.f32.mrf.mxu0
        %542 = vmatprep.mubr.f32.mxu0 0.0
        %543 = vmatmul.mubr.f32.gmra.mxu0 %v409
        %v544 = vpop.f32.mrf.mxu0
        %v545 = vadd.f32 %v352, %v544
        %v546 = vpop.f32.mrf.mxu0
        %547 = vmatprep.mubr.f32.mxu0 0.0
        %548 = vmatmul.mubr.f32.gmra.mxu0 %v412
        %v549 = vpop.f32.mrf.mxu0
        %v550 = vadd.f32 %v357, %v549
        %v551 = vpop.f32.mrf.mxu0
        %552 = vmatprep.mubr.f32.mxu0 0.0
        %553 = vmatmul.mubr.f32.gmra.mxu0 %v415
        %v554 = vpop.f32.mrf.mxu0
        %v555 = vadd.f32 %v362, %v554
        %v556 = vpop.f32.mrf.mxu0
        %557 = vmatprep.mubr.f32.mxu0 0.0
        %558 = vmatmul.mubr.f32.gmra.mxu0 %v418
        %v559 = vpop.f32.mrf.mxu0
        %v560 = vadd.f32 %v367, %v559
        %v561 = vpop.f32.mrf.mxu0
        %562 = vmatprep.mubr.f32.mxu0 0.0
        %563 = vmatmul.mubr.f32.gmra.mxu0 %v421
        %v564 = vpop.f32.mrf.mxu0
        %v565 = vadd.f32 %v372, %v564
        %v566 = vpop.f32.mrf.mxu0
        %567 = vdwg.mxu0
        %v568 = vmax.f32 %v490, 0.0
        %v569 = vmax.f32 %v495, 0.0
        %v570 = vmax.f32 %v500, 0.0
        %v571 = vmax.f32 %v505, 0.0
        %v572 = vmax.f32 %v510, 0.0
        %v573 = vmax.f32 %v515, 0.0
        %v574 = vmax.f32 %v520, 0.0
        %v575 = vmax.f32 %v525, 0.0
        %v576 = vmax.f32 %v530, 0.0
        %v577 = vmax.f32 %v535, 0.0
        %v578 = vmax.f32 %v540, 0.0
        %v579 = vmax.f32 %v545, 0.0
        %v580 = vmax.f32 %v550, 0.0
        %v581 = vmax.f32 %v555, 0.0
        %v582 = vmax.f32 %v560, 0.0
        %v583 = vmax.f32 %v565, 0.0
        %584 = vst [vmem:[%s232] sm:$0xff] %v568
        %585 = vst [vmem:[%s232 + $0x8] sm:$0xff] %v569
        %586 = vst [vmem:[%s232 + $0x10] sm:$0xff] %v570
        %587 = vst [vmem:[%s232 + $0x18] sm:$0xff] %v571
        %588 = vst [vmem:[%s232 + $0x20] sm:$0xff] %v572
        %589 = vst [vmem:[%s232 + $0x28] sm:$0xff] %v573
        %590 = vst [vmem:[%s232 + $0x30] sm:$0xff] %v574
        %591 = vst [vmem:[%s232 + $0x38] sm:$0xff] %v575
        %592 = vst [vmem:[%s232 + $0x40] sm:$0xff] %v576
        %593 = vst [vmem:[%s232 + $0x48] sm:$0xff] %v577
        %594 = vst [vmem:[%s232 + $0x50] sm:$0xff] %v578
        %595 = vst [vmem:[%s232 + $0x58] sm:$0xff] %v579
        %596 = vst [vmem:[%s232 + $0x60] sm:$0xff] %v580
        %597 = vst [vmem:[%s232 + $0x68] sm:$0xff] %v581
        %598 = vst [vmem:[%s232 + $0x70] sm:$0xff] %v582
        %599 = vst [vmem:[%s232 + $0x78] sm:$0xff] %v583
        %p600 = scmp.eq.s32.totalorder %s23, 0
        // Predicated region
        $region33: #{ranzcr_forward.1} parent=31 // pred_check
          %p601 = pneg %p600
        $region34: #{ranzcr_forward.1} parent=31 // pred_check_branch
          %603 = sbr.rel (%p601) target = $region36
        $region35: #{ranzcr_forward.1} parent=31 // pred_region
          %604 = vst [vmem:[%s260] sm:$0x1] 0.0
        $region36: #{ranzcr_forward.1} parent=31 // pred_fallthru
          _
        %v605 = vld [vmem:[%s260] sm:$0x1]
        %606 = vadd.xlane.f32.xlu0 %v568
        %v607 = vpop.xlane.xlu0 %606
        %608 = vadd.xlane.f32.xlu0 %v569
        %v609 = vpop.xlane.xlu0 %608
        %610 = vadd.xlane.f32.xlu0 %v570
        %v611 = vpop.xlane.xlu0 %610
        %612 = vadd.xlane.f32.xlu0 %v571
        %v613 = vpop.xlane.xlu0 %612
        %614 = vadd.xlane.f32.xlu0 %v572
        %v615 = vpop.xlane.xlu0 %614
        %616 = vadd.xlane.f32.xlu0 %v573
        %v617 = vpop.xlane.xlu0 %616
        %618 = vadd.xlane.f32.xlu0 %v574
        %v619 = vpop.xlane.xlu0 %618
        %620 = vadd.xlane.f32.xlu0 %v575
        %v621 = vpop.xlane.xlu0 %620
        %622 = vadd.xlane.f32.xlu0 %v576
        %v623 = vpop.xlane.xlu0 %622
        %624 = vadd.xlane.f32.xlu0 %v577
        %v625 = vpop.xlane.xlu0 %624
        %626 = vadd.xlane.f32.xlu0 %v578
        %v627 = vpop.xlane.xlu0 %626
        %628 = vadd.xlane.f32.xlu0 %v579
        %v629 = vpop.xlane.xlu0 %628
        %630 = vadd.xlane.f32.xlu0 %v580
        %v631 = vpop.xlane.xlu0 %630
        %632 = vadd.xlane.f32.xlu0 %v581
        %v633 = vpop.xlane.xlu0 %632
        %634 = vadd.xlane.f32.xlu0 %v582
        %v635 = vpop.xlane.xlu0 %634
        %636 = vadd.xlane.f32.xlu0 %v583
        %v637 = vpop.xlane.xlu0 %636
        %v654 = vlaneseq
        %v655 = vshrl.u32 %v654, 7
        %v656 = vsub.s32 0, %v655
        %v657 = vrot.slane %v607, %v656
        %v658 = vlaneseq
        %v659 = vshrl.u32 %v658, 7
        %v660 = vsub.s32 1, %v659
        %v661 = vrot.slane %v607, %v660
        %v662 = vlaneseq
        %v663 = vshrl.u32 %v662, 7
        %v664 = vsub.s32 2, %v663
        %v665 = vrot.slane %v607, %v664
        %v666 = vlaneseq
        %v667 = vshrl.u32 %v666, 7
        %v668 = vsub.s32 3, %v667
        %v669 = vrot.slane %v607, %v668
        %v670 = vlaneseq
        %v671 = vshrl.u32 %v670, 7
        %v672 = vsub.s32 4, %v671
        %v673 = vrot.slane %v607, %v672
        %v674 = vlaneseq
        %v675 = vshrl.u32 %v674, 7
        %v676 = vsub.s32 5, %v675
        %v677 = vrot.slane %v607, %v676
        %v678 = vlaneseq
        %v679 = vshrl.u32 %v678, 7
        %v680 = vsub.s32 6, %v679
        %v681 = vrot.slane %v607, %v680
        %v682 = vlaneseq
        %v683 = vshrl.u32 %v682, 7
        %v684 = vsub.s32 7, %v683
        %v685 = vrot.slane %v607, %v684
        %v686 = vlaneseq
        %v687 = vshrl.u32 %v686, 7
        %v688 = vsub.s32 0, %v687
        %v689 = vrot.slane %v609, %v688
        %v690 = vlaneseq
        %v691 = vshrl.u32 %v690, 7
        %v692 = vsub.s32 1, %v691
        %v693 = vrot.slane %v609, %v692
        %v694 = vlaneseq
        %v695 = vshrl.u32 %v694, 7
        %v696 = vsub.s32 2, %v695
        %v697 = vrot.slane %v609, %v696
        %v698 = vlaneseq
        %v699 = vshrl.u32 %v698, 7
        %v700 = vsub.s32 3, %v699
        %v701 = vrot.slane %v609, %v700
        %v702 = vlaneseq
        %v703 = vshrl.u32 %v702, 7
        %v704 = vsub.s32 4, %v703
        %v705 = vrot.slane %v609, %v704
        %v706 = vlaneseq
        %v707 = vshrl.u32 %v706, 7
        %v708 = vsub.s32 5, %v707
        %v709 = vrot.slane %v609, %v708
        %v710 = vlaneseq
        %v711 = vshrl.u32 %v710, 7
        %v712 = vsub.s32 6, %v711
        %v713 = vrot.slane %v609, %v712
        %v714 = vlaneseq
        %v715 = vshrl.u32 %v714, 7
        %v716 = vsub.s32 7, %v715
        %v717 = vrot.slane %v609, %v716
        %v718 = vlaneseq
        %v719 = vshrl.u32 %v718, 7
        %v720 = vsub.s32 0, %v719
        %v721 = vrot.slane %v611, %v720
        %v722 = vlaneseq
        %v723 = vshrl.u32 %v722, 7
        %v724 = vsub.s32 1, %v723
        %v725 = vrot.slane %v611, %v724
        %v726 = vlaneseq
        %v727 = vshrl.u32 %v726, 7
        %v728 = vsub.s32 2, %v727
        %v729 = vrot.slane %v611, %v728
        %v730 = vlaneseq
        %v731 = vshrl.u32 %v730, 7
        %v732 = vsub.s32 3, %v731
        %v733 = vrot.slane %v611, %v732
        %v734 = vlaneseq
        %v735 = vshrl.u32 %v734, 7
        %v736 = vsub.s32 4, %v735
        %v737 = vrot.slane %v611, %v736
        %v738 = vlaneseq
        %v739 = vshrl.u32 %v738, 7
        %v740 = vsub.s32 5, %v739
        %v741 = vrot.slane %v611, %v740
        %v742 = vlaneseq
        %v743 = vshrl.u32 %v742, 7
        %v744 = vsub.s32 6, %v743
        %v745 = vrot.slane %v611, %v744
        %v746 = vlaneseq
        %v747 = vshrl.u32 %v746, 7
        %v748 = vsub.s32 7, %v747
        %v749 = vrot.slane %v611, %v748
        %v750 = vlaneseq
        %v751 = vshrl.u32 %v750, 7
        %v752 = vsub.s32 0, %v751
        %v753 = vrot.slane %v613, %v752
        %v754 = vlaneseq
        %v755 = vshrl.u32 %v754, 7
        %v756 = vsub.s32 1, %v755
        %v757 = vrot.slane %v613, %v756
        %v758 = vlaneseq
        %v759 = vshrl.u32 %v758, 7
        %v760 = vsub.s32 2, %v759
        %v761 = vrot.slane %v613, %v760
        %v762 = vlaneseq
        %v763 = vshrl.u32 %v762, 7
        %v764 = vsub.s32 3, %v763
        %v765 = vrot.slane %v613, %v764
        %v766 = vlaneseq
        %v767 = vshrl.u32 %v766, 7
        %v768 = vsub.s32 4, %v767
        %v769 = vrot.slane %v613, %v768
        %v770 = vlaneseq
        %v771 = vshrl.u32 %v770, 7
        %v772 = vsub.s32 5, %v771
        %v773 = vrot.slane %v613, %v772
        %v774 = vlaneseq
        %v775 = vshrl.u32 %v774, 7
        %v776 = vsub.s32 6, %v775
        %v777 = vrot.slane %v613, %v776
        %v778 = vlaneseq
        %v779 = vshrl.u32 %v778, 7
        %v780 = vsub.s32 7, %v779
        %v781 = vrot.slane %v613, %v780
        %v782 = vlaneseq
        %v783 = vshrl.u32 %v782, 7
        %v784 = vsub.s32 0, %v783
        %v785 = vrot.slane %v615, %v784
        %v786 = vlaneseq
        %v787 = vshrl.u32 %v786, 7
        %v788 = vsub.s32 1, %v787
        %v789 = vrot.slane %v615, %v788
        %v790 = vlaneseq
        %v791 = vshrl.u32 %v790, 7
        %v792 = vsub.s32 2, %v791
        %v793 = vrot.slane %v615, %v792
        %v794 = vlaneseq
        %v795 = vshrl.u32 %v794, 7
        %v796 = vsub.s32 3, %v795
        %v797 = vrot.slane %v615, %v796
        %v798 = vlaneseq
        %v799 = vshrl.u32 %v798, 7
        %v800 = vsub.s32 4, %v799
        %v801 = vrot.slane %v615, %v800
        %v802 = vlaneseq
        %v803 = vshrl.u32 %v802, 7
        %v804 = vsub.s32 5, %v803
        %v805 = vrot.slane %v615, %v804
        %v806 = vlaneseq
        %v807 = vshrl.u32 %v806, 7
        %v808 = vsub.s32 6, %v807
        %v809 = vrot.slane %v615, %v808
        %v810 = vlaneseq
        %v811 = vshrl.u32 %v810, 7
        %v812 = vsub.s32 7, %v811
        %v813 = vrot.slane %v615, %v812
        %v814 = vlaneseq
        %v815 = vshrl.u32 %v814, 7
        %v816 = vsub.s32 0, %v815
        %v817 = vrot.slane %v617, %v816
        %v818 = vlaneseq
        %v819 = vshrl.u32 %v818, 7
        %v820 = vsub.s32 1, %v819
        %v821 = vrot.slane %v617, %v820
        %v822 = vlaneseq
        %v823 = vshrl.u32 %v822, 7
        %v824 = vsub.s32 2, %v823
        %v825 = vrot.slane %v617, %v824
        %v826 = vlaneseq
        %v827 = vshrl.u32 %v826, 7
        %v828 = vsub.s32 3, %v827
        %v829 = vrot.slane %v617, %v828
        %v830 = vlaneseq
        %v831 = vshrl.u32 %v830, 7
        %v832 = vsub.s32 4, %v831
        %v833 = vrot.slane %v617, %v832
        %v834 = vlaneseq
        %v835 = vshrl.u32 %v834, 7
        %v836 = vsub.s32 5, %v835
        %v837 = vrot.slane %v617, %v836
        %v838 = vlaneseq
        %v839 = vshrl.u32 %v838, 7
        %v840 = vsub.s32 6, %v839
        %v841 = vrot.slane %v617, %v840
        %v842 = vlaneseq
        %v843 = vshrl.u32 %v842, 7
        %v844 = vsub.s32 7, %v843
        %v845 = vrot.slane %v617, %v844
        %v846 = vlaneseq
        %v847 = vshrl.u32 %v846, 7
        %v848 = vsub.s32 0, %v847
        %v849 = vrot.slane %v619, %v848
        %v850 = vlaneseq
        %v851 = vshrl.u32 %v850, 7
        %v852 = vsub.s32 1, %v851
        %v853 = vrot.slane %v619, %v852
        %v854 = vlaneseq
        %v855 = vshrl.u32 %v854, 7
        %v856 = vsub.s32 2, %v855
        %v857 = vrot.slane %v619, %v856
        %v858 = vlaneseq
        %v859 = vshrl.u32 %v858, 7
        %v860 = vsub.s32 3, %v859
        %v861 = vrot.slane %v619, %v860
        %v862 = vlaneseq
        %v863 = vshrl.u32 %v862, 7
        %v864 = vsub.s32 4, %v863
        %v865 = vrot.slane %v619, %v864
        %v866 = vlaneseq
        %v867 = vshrl.u32 %v866, 7
        %v868 = vsub.s32 5, %v867
        %v869 = vrot.slane %v619, %v868
        %v870 = vlaneseq
        %v871 = vshrl.u32 %v870, 7
        %v872 = vsub.s32 6, %v871
        %v873 = vrot.slane %v619, %v872
        %v874 = vlaneseq
        %v875 = vshrl.u32 %v874, 7
        %v876 = vsub.s32 7, %v875
        %v877 = vrot.slane %v619, %v876
        %v878 = vlaneseq
        %v879 = vshrl.u32 %v878, 7
        %v880 = vsub.s32 0, %v879
        %v881 = vrot.slane %v621, %v880
        %v882 = vlaneseq
        %v883 = vshrl.u32 %v882, 7
        %v884 = vsub.s32 1, %v883
        %v885 = vrot.slane %v621, %v884
        %v886 = vlaneseq
        %v887 = vshrl.u32 %v886, 7
        %v888 = vsub.s32 2, %v887
        %v889 = vrot.slane %v621, %v888
        %v890 = vlaneseq
        %v891 = vshrl.u32 %v890, 7
        %v892 = vsub.s32 3, %v891
        %v893 = vrot.slane %v621, %v892
        %v894 = vlaneseq
        %v895 = vshrl.u32 %v894, 7
        %v896 = vsub.s32 4, %v895
        %v897 = vrot.slane %v621, %v896
        %v898 = vlaneseq
        %v899 = vshrl.u32 %v898, 7
        %v900 = vsub.s32 5, %v899
        %v901 = vrot.slane %v621, %v900
        %v902 = vlaneseq
        %v903 = vshrl.u32 %v902, 7
        %v904 = vsub.s32 6, %v903
        %v905 = vrot.slane %v621, %v904
        %v906 = vlaneseq
        %v907 = vshrl.u32 %v906, 7
        %v908 = vsub.s32 7, %v907
        %v909 = vrot.slane %v621, %v908
        %v910 = vlaneseq
        %v911 = vshrl.u32 %v910, 7
        %v912 = vsub.s32 0, %v911
        %v913 = vrot.slane %v623, %v912
        %v914 = vlaneseq
        %v915 = vshrl.u32 %v914, 7
        %v916 = vsub.s32 1, %v915
        %v917 = vrot.slane %v623, %v916
        %v918 = vlaneseq
        %v919 = vshrl.u32 %v918, 7
        %v920 = vsub.s32 2, %v919
        %v921 = vrot.slane %v623, %v920
        %v922 = vlaneseq
        %v923 = vshrl.u32 %v922, 7
        %v924 = vsub.s32 3, %v923
        %v925 = vrot.slane %v623, %v924
        %v926 = vlaneseq
        %v927 = vshrl.u32 %v926, 7
        %v928 = vsub.s32 4, %v927
        %v929 = vrot.slane %v623, %v928
        %v930 = vlaneseq
        %v931 = vshrl.u32 %v930, 7
        %v932 = vsub.s32 5, %v931
        %v933 = vrot.slane %v623, %v932
        %v934 = vlaneseq
        %v935 = vshrl.u32 %v934, 7
        %v936 = vsub.s32 6, %v935
        %v937 = vrot.slane %v623, %v936
        %v938 = vlaneseq
        %v939 = vshrl.u32 %v938, 7
        %v940 = vsub.s32 7, %v939
        %v941 = vrot.slane %v623, %v940
        %v942 = vlaneseq
        %v943 = vshrl.u32 %v942, 7
        %v944 = vsub.s32 0, %v943
        %v945 = vrot.slane %v625, %v944
        %v946 = vlaneseq
        %v947 = vshrl.u32 %v946, 7
        %v948 = vsub.s32 1, %v947
        %v949 = vrot.slane %v625, %v948
        %v950 = vlaneseq
        %v951 = vshrl.u32 %v950, 7
        %v952 = vsub.s32 2, %v951
        %v953 = vrot.slane %v625, %v952
        %v954 = vlaneseq
        %v955 = vshrl.u32 %v954, 7
        %v956 = vsub.s32 3, %v955
        %v957 = vrot.slane %v625, %v956
        %v958 = vlaneseq
        %v959 = vshrl.u32 %v958, 7
        %v960 = vsub.s32 4, %v959
        %v961 = vrot.slane %v625, %v960
        %v962 = vlaneseq
        %v963 = vshrl.u32 %v962, 7
        %v964 = vsub.s32 5, %v963
        %v965 = vrot.slane %v625, %v964
        %v966 = vlaneseq
        %v967 = vshrl.u32 %v966, 7
        %v968 = vsub.s32 6, %v967
        %v969 = vrot.slane %v625, %v968
        %v970 = vlaneseq
        %v971 = vshrl.u32 %v970, 7
        %v972 = vsub.s32 7, %v971
        %v973 = vrot.slane %v625, %v972
        %v974 = vlaneseq
        %v975 = vshrl.u32 %v974, 7
        %v976 = vsub.s32 0, %v975
        %v977 = vrot.slane %v627, %v976
        %v978 = vlaneseq
        %v979 = vshrl.u32 %v978, 7
        %v980 = vsub.s32 1, %v979
        %v981 = vrot.slane %v627, %v980
        %v982 = vlaneseq
        %v983 = vshrl.u32 %v982, 7
        %v984 = vsub.s32 2, %v983
        %v985 = vrot.slane %v627, %v984
        %v986 = vlaneseq
        %v987 = vshrl.u32 %v986, 7
        %v988 = vsub.s32 3, %v987
        %v989 = vrot.slane %v627, %v988
        %v990 = vlaneseq
        %v991 = vshrl.u32 %v990, 7
        %v992 = vsub.s32 4, %v991
        %v993 = vrot.slane %v627, %v992
        %v994 = vlaneseq
        %v995 = vshrl.u32 %v994, 7
        %v996 = vsub.s32 5, %v995
        %v997 = vrot.slane %v627, %v996
        %v998 = vlaneseq
        %v999 = vshrl.u32 %v998, 7
        %v1000 = vsub.s32 6, %v999
        %v1001 = vrot.slane %v627, %v1000
        %v1002 = vlaneseq
        %v1003 = vshrl.u32 %v1002, 7
        %v1004 = vsub.s32 7, %v1003
        %v1005 = vrot.slane %v627, %v1004
        %v1006 = vlaneseq
        %v1007 = vshrl.u32 %v1006, 7
        %v1008 = vsub.s32 0, %v1007
        %v1009 = vrot.slane %v629, %v1008
        %v1010 = vlaneseq
        %v1011 = vshrl.u32 %v1010, 7
        %v1012 = vsub.s32 1, %v1011
        %v1013 = vrot.slane %v629, %v1012
        %v1014 = vlaneseq
        %v1015 = vshrl.u32 %v1014, 7
        %v1016 = vsub.s32 2, %v1015
        %v1017 = vrot.slane %v629, %v1016
        %v1018 = vlaneseq
        %v1019 = vshrl.u32 %v1018, 7
        %v1020 = vsub.s32 3, %v1019
        %v1021 = vrot.slane %v629, %v1020
        %v1022 = vlaneseq
        %v1023 = vshrl.u32 %v1022, 7
        %v1024 = vsub.s32 4, %v1023
        %v1025 = vrot.slane %v629, %v1024
        %v1026 = vlaneseq
        %v1027 = vshrl.u32 %v1026, 7
        %v1028 = vsub.s32 5, %v1027
        %v1029 = vrot.slane %v629, %v1028
        %v1030 = vlaneseq
        %v1031 = vshrl.u32 %v1030, 7
        %v1032 = vsub.s32 6, %v1031
        %v1033 = vrot.slane %v629, %v1032
        %v1034 = vlaneseq
        %v1035 = vshrl.u32 %v1034, 7
        %v1036 = vsub.s32 7, %v1035
        %v1037 = vrot.slane %v629, %v1036
        %v1038 = vlaneseq
        %v1039 = vshrl.u32 %v1038, 7
        %v1040 = vsub.s32 0, %v1039
        %v1041 = vrot.slane %v631, %v1040
        %v1042 = vlaneseq
        %v1043 = vshrl.u32 %v1042, 7
        %v1044 = vsub.s32 1, %v1043
        %v1045 = vrot.slane %v631, %v1044
        %v1046 = vlaneseq
        %v1047 = vshrl.u32 %v1046, 7
        %v1048 = vsub.s32 2, %v1047
        %v1049 = vrot.slane %v631, %v1048
        %v1050 = vlaneseq
        %v1051 = vshrl.u32 %v1050, 7
        %v1052 = vsub.s32 3, %v1051
        %v1053 = vrot.slane %v631, %v1052
        %v1054 = vlaneseq
        %v1055 = vshrl.u32 %v1054, 7
        %v1056 = vsub.s32 4, %v1055
        %v1057 = vrot.slane %v631, %v1056
        %v1058 = vlaneseq
        %v1059 = vshrl.u32 %v1058, 7
        %v1060 = vsub.s32 5, %v1059
        %v1061 = vrot.slane %v631, %v1060
        %v1062 = vlaneseq
        %v1063 = vshrl.u32 %v1062, 7
        %v1064 = vsub.s32 6, %v1063
        %v1065 = vrot.slane %v631, %v1064
        %v1066 = vlaneseq
        %v1067 = vshrl.u32 %v1066, 7
        %v1068 = vsub.s32 7, %v1067
        %v1069 = vrot.slane %v631, %v1068
        %v1070 = vlaneseq
        %v1071 = vshrl.u32 %v1070, 7
        %v1072 = vsub.s32 0, %v1071
        %v1073 = vrot.slane %v633, %v1072
        %v1074 = vlaneseq
        %v1075 = vshrl.u32 %v1074, 7
        %v1076 = vsub.s32 1, %v1075
        %v1077 = vrot.slane %v633, %v1076
        %v1078 = vlaneseq
        %v1079 = vshrl.u32 %v1078, 7
        %v1080 = vsub.s32 2, %v1079
        %v1081 = vrot.slane %v633, %v1080
        %v1082 = vlaneseq
        %v1083 = vshrl.u32 %v1082, 7
        %v1084 = vsub.s32 3, %v1083
        %v1085 = vrot.slane %v633, %v1084
        %v1086 = vlaneseq
        %v1087 = vshrl.u32 %v1086, 7
        %v1088 = vsub.s32 4, %v1087
        %v1089 = vrot.slane %v633, %v1088
        %v1090 = vlaneseq
        %v1091 = vshrl.u32 %v1090, 7
        %v1092 = vsub.s32 5, %v1091
        %v1093 = vrot.slane %v633, %v1092
        %v1094 = vlaneseq
        %v1095 = vshrl.u32 %v1094, 7
        %v1096 = vsub.s32 6, %v1095
        %v1097 = vrot.slane %v633, %v1096
        %v1098 = vlaneseq
        %v1099 = vshrl.u32 %v1098, 7
        %v1100 = vsub.s32 7, %v1099
        %v1101 = vrot.slane %v633, %v1100
        %v1102 = vlaneseq
        %v1103 = vshrl.u32 %v1102, 7
        %v1104 = vsub.s32 0, %v1103
        %v1105 = vrot.slane %v635, %v1104
        %v1106 = vlaneseq
        %v1107 = vshrl.u32 %v1106, 7
        %v1108 = vsub.s32 1, %v1107
        %v1109 = vrot.slane %v635, %v1108
        %v1110 = vlaneseq
        %v1111 = vshrl.u32 %v1110, 7
        %v1112 = vsub.s32 2, %v1111
        %v1113 = vrot.slane %v635, %v1112
        %v1114 = vlaneseq
        %v1115 = vshrl.u32 %v1114, 7
        %v1116 = vsub.s32 3, %v1115
        %v1117 = vrot.slane %v635, %v1116
        %v1118 = vlaneseq
        %v1119 = vshrl.u32 %v1118, 7
        %v1120 = vsub.s32 4, %v1119
        %v1121 = vrot.slane %v635, %v1120
        %v1122 = vlaneseq
        %v1123 = vshrl.u32 %v1122, 7
        %v1124 = vsub.s32 5, %v1123
        %v1125 = vrot.slane %v635, %v1124
        %v1126 = vlaneseq
        %v1127 = vshrl.u32 %v1126, 7
        %v1128 = vsub.s32 6, %v1127
        %v1129 = vrot.slane %v635, %v1128
        %v1130 = vlaneseq
        %v1131 = vshrl.u32 %v1130, 7
        %v1132 = vsub.s32 7, %v1131
        %v1133 = vrot.slane %v635, %v1132
        %v1134 = vlaneseq
        %v1135 = vshrl.u32 %v1134, 7
        %v1136 = vsub.s32 0, %v1135
        %v1137 = vrot.slane %v637, %v1136
        %v1138 = vlaneseq
        %v1139 = vshrl.u32 %v1138, 7
        %v1140 = vsub.s32 1, %v1139
        %v1141 = vrot.slane %v637, %v1140
        %v1142 = vlaneseq
        %v1143 = vshrl.u32 %v1142, 7
        %v1144 = vsub.s32 2, %v1143
        %v1145 = vrot.slane %v637, %v1144
        %v1146 = vlaneseq
        %v1147 = vshrl.u32 %v1146, 7
        %v1148 = vsub.s32 3, %v1147
        %v1149 = vrot.slane %v637, %v1148
        %v1150 = vlaneseq
        %v1151 = vshrl.u32 %v1150, 7
        %v1152 = vsub.s32 4, %v1151
        %v1153 = vrot.slane %v637, %v1152
        %v1154 = vlaneseq
        %v1155 = vshrl.u32 %v1154, 7
        %v1156 = vsub.s32 5, %v1155
        %v1157 = vrot.slane %v637, %v1156
        %v1158 = vlaneseq
        %v1159 = vshrl.u32 %v1158, 7
        %v1160 = vsub.s32 6, %v1159
        %v1161 = vrot.slane %v637, %v1160
        %v1162 = vlaneseq
        %v1163 = vshrl.u32 %v1162, 7
        %v1164 = vsub.s32 7, %v1163
        %v1165 = vrot.slane %v637, %v1164
        %v1166 = vcombine.low %v657, %v661
        %v1167 = vcombine.low %v665, %v669
        %v1168 = vcombine.low %v673, %v677
        %v1169 = vcombine.low %v681, %v685
        %v1171 = vunpack.c.l.s4 1966171168
        %v1172 = vunpack.c.0.s8 %v1171
        %v1173 = vlaneseq
        %v1174 = vshrl.u32 %v1173, 7
        %v1175 = vsub.s32 %v1172, %v1174
        %v1176 = vrot.slane %v1166, %v1175
        %v1178 = vunpack.c.l.s4 1966171168
        %v1179 = vunpack.c.0.s8 %v1178
        %v1180 = vlaneseq
        %v1181 = vshrl.u32 %v1180, 7
        %v1182 = vsub.s32 %v1179, %v1181
        %v1183 = vrot.slane %v1167, %v1182
        %v1185 = vunpack.c.l.s4 1966171168
        %v1186 = vunpack.c.0.s8 %v1185
        %v1187 = vlaneseq
        %v1188 = vshrl.u32 %v1187, 7
        %v1189 = vsub.s32 %v1186, %v1188
        %v1190 = vrot.slane %v1168, %v1189
        %v1192 = vunpack.c.l.s4 1966171168
        %v1193 = vunpack.c.0.s8 %v1192
        %v1194 = vlaneseq
        %v1195 = vshrl.u32 %v1194, 7
        %v1196 = vsub.s32 %v1193, %v1195
        %v1197 = vrot.slane %v1169, %v1196
        %v1198 = vcombine.low %v1176, %v1183
        %v1199 = vcombine.low %v1190, %v1197
        %v1201 = vunpack.c.l.s4 1966171168
        %v1202 = vunpack.c.0.s8 %v1201
        %v1203 = vlaneseq
        %v1204 = vshrl.u32 %v1203, 7
        %v1205 = vsub.s32 %v1202, %v1204
        %v1206 = vrot.slane %v1198, %v1205
        %v1208 = vunpack.c.l.s4 1966171168
        %v1209 = vunpack.c.0.s8 %v1208
        %v1210 = vlaneseq
        %v1211 = vshrl.u32 %v1210, 7
        %v1212 = vsub.s32 %v1209, %v1211
        %v1213 = vrot.slane %v1199, %v1212
        %v1214 = vcombine.low %v1206, %v1213
        %v1215 = vcombine.low %v689, %v693
        %v1216 = vcombine.low %v697, %v701
        %v1217 = vcombine.low %v705, %v709
        %v1218 = vcombine.low %v713, %v717
        %v1220 = vunpack.c.l.s4 1966171168
        %v1221 = vunpack.c.0.s8 %v1220
        %v1222 = vlaneseq
        %v1223 = vshrl.u32 %v1222, 7
        %v1224 = vsub.s32 %v1221, %v1223
        %v1225 = vrot.slane %v1215, %v1224
        %v1227 = vunpack.c.l.s4 1966171168
        %v1228 = vunpack.c.0.s8 %v1227
        %v1229 = vlaneseq
        %v1230 = vshrl.u32 %v1229, 7
        %v1231 = vsub.s32 %v1228, %v1230
        %v1232 = vrot.slane %v1216, %v1231
        %v1234 = vunpack.c.l.s4 1966171168
        %v1235 = vunpack.c.0.s8 %v1234
        %v1236 = vlaneseq
        %v1237 = vshrl.u32 %v1236, 7
        %v1238 = vsub.s32 %v1235, %v1237
        %v1239 = vrot.slane %v1217, %v1238
        %v1241 = vunpack.c.l.s4 1966171168
        %v1242 = vunpack.c.0.s8 %v1241
        %v1243 = vlaneseq
        %v1244 = vshrl.u32 %v1243, 7
        %v1245 = vsub.s32 %v1242, %v1244
        %v1246 = vrot.slane %v1218, %v1245
        %v1247 = vcombine.low %v1225, %v1232
        %v1248 = vcombine.low %v1239, %v1246
        %v1250 = vunpack.c.l.s4 1966171168
        %v1251 = vunpack.c.0.s8 %v1250
        %v1252 = vlaneseq
        %v1253 = vshrl.u32 %v1252, 7
        %v1254 = vsub.s32 %v1251, %v1253
        %v1255 = vrot.slane %v1247, %v1254
        %v1257 = vunpack.c.l.s4 1966171168
        %v1258 = vunpack.c.0.s8 %v1257
        %v1259 = vlaneseq
        %v1260 = vshrl.u32 %v1259, 7
        %v1261 = vsub.s32 %v1258, %v1260
        %v1262 = vrot.slane %v1248, %v1261
        %v1263 = vcombine.low %v1255, %v1262
        %v1264 = vcombine.low %v721, %v725
        %v1265 = vcombine.low %v729, %v733
        %v1266 = vcombine.low %v737, %v741
        %v1267 = vcombine.low %v745, %v749
        %v1269 = vunpack.c.l.s4 1966171168
        %v1270 = vunpack.c.0.s8 %v1269
        %v1271 = vlaneseq
        %v1272 = vshrl.u32 %v1271, 7
        %v1273 = vsub.s32 %v1270, %v1272
        %v1274 = vrot.slane %v1264, %v1273
        %v1276 = vunpack.c.l.s4 1966171168
        %v1277 = vunpack.c.0.s8 %v1276
        %v1278 = vlaneseq
        %v1279 = vshrl.u32 %v1278, 7
        %v1280 = vsub.s32 %v1277, %v1279
        %v1281 = vrot.slane %v1265, %v1280
        %v1283 = vunpack.c.l.s4 1966171168
        %v1284 = vunpack.c.0.s8 %v1283
        %v1285 = vlaneseq
        %v1286 = vshrl.u32 %v1285, 7
        %v1287 = vsub.s32 %v1284, %v1286
        %v1288 = vrot.slane %v1266, %v1287
        %v1290 = vunpack.c.l.s4 1966171168
        %v1291 = vunpack.c.0.s8 %v1290
        %v1292 = vlaneseq
        %v1293 = vshrl.u32 %v1292, 7
        %v1294 = vsub.s32 %v1291, %v1293
        %v1295 = vrot.slane %v1267, %v1294
        %v1296 = vcombine.low %v1274, %v1281
        %v1297 = vcombine.low %v1288, %v1295
        %v1299 = vunpack.c.l.s4 1966171168
        %v1300 = vunpack.c.0.s8 %v1299
        %v1301 = vlaneseq
        %v1302 = vshrl.u32 %v1301, 7
        %v1303 = vsub.s32 %v1300, %v1302
        %v1304 = vrot.slane %v1296, %v1303
        %v1306 = vunpack.c.l.s4 1966171168
        %v1307 = vunpack.c.0.s8 %v1306
        %v1308 = vlaneseq
        %v1309 = vshrl.u32 %v1308, 7
        %v1310 = vsub.s32 %v1307, %v1309
        %v1311 = vrot.slane %v1297, %v1310
        %v1312 = vcombine.low %v1304, %v1311
        %v1313 = vcombine.low %v753, %v757
        %v1314 = vcombine.low %v761, %v765
        %v1315 = vcombine.low %v769, %v773
        %v1316 = vcombine.low %v777, %v781
        %v1318 = vunpack.c.l.s4 1966171168
        %v1319 = vunpack.c.0.s8 %v1318
        %v1320 = vlaneseq
        %v1321 = vshrl.u32 %v1320, 7
        %v1322 = vsub.s32 %v1319, %v1321
        %v1323 = vrot.slane %v1313, %v1322
        %v1325 = vunpack.c.l.s4 1966171168
        %v1326 = vunpack.c.0.s8 %v1325
        %v1327 = vlaneseq
        %v1328 = vshrl.u32 %v1327, 7
        %v1329 = vsub.s32 %v1326, %v1328
        %v1330 = vrot.slane %v1314, %v1329
        %v1332 = vunpack.c.l.s4 1966171168
        %v1333 = vunpack.c.0.s8 %v1332
        %v1334 = vlaneseq
        %v1335 = vshrl.u32 %v1334, 7
        %v1336 = vsub.s32 %v1333, %v1335
        %v1337 = vrot.slane %v1315, %v1336
        %v1339 = vunpack.c.l.s4 1966171168
        %v1340 = vunpack.c.0.s8 %v1339
        %v1341 = vlaneseq
        %v1342 = vshrl.u32 %v1341, 7
        %v1343 = vsub.s32 %v1340, %v1342
        %v1344 = vrot.slane %v1316, %v1343
        %v1345 = vcombine.low %v1323, %v1330
        %v1346 = vcombine.low %v1337, %v1344
        %v1348 = vunpack.c.l.s4 1966171168
        %v1349 = vunpack.c.0.s8 %v1348
        %v1350 = vlaneseq
        %v1351 = vshrl.u32 %v1350, 7
        %v1352 = vsub.s32 %v1349, %v1351
        %v1353 = vrot.slane %v1345, %v1352
        %v1355 = vunpack.c.l.s4 1966171168
        %v1356 = vunpack.c.0.s8 %v1355
        %v1357 = vlaneseq
        %v1358 = vshrl.u32 %v1357, 7
        %v1359 = vsub.s32 %v1356, %v1358
        %v1360 = vrot.slane %v1346, %v1359
        %v1361 = vcombine.low %v1353, %v1360
        %v1362 = vcombine.low %v785, %v789
        %v1363 = vcombine.low %v793, %v797
        %v1364 = vcombine.low %v801, %v805
        %v1365 = vcombine.low %v809, %v813
        %v1367 = vunpack.c.l.s4 1966171168
        %v1368 = vunpack.c.0.s8 %v1367
        %v1369 = vlaneseq
        %v1370 = vshrl.u32 %v1369, 7
        %v1371 = vsub.s32 %v1368, %v1370
        %v1372 = vrot.slane %v1362, %v1371
        %v1374 = vunpack.c.l.s4 1966171168
        %v1375 = vunpack.c.0.s8 %v1374
        %v1376 = vlaneseq
        %v1377 = vshrl.u32 %v1376, 7
        %v1378 = vsub.s32 %v1375, %v1377
        %v1379 = vrot.slane %v1363, %v1378
        %v1381 = vunpack.c.l.s4 1966171168
        %v1382 = vunpack.c.0.s8 %v1381
        %v1383 = vlaneseq
        %v1384 = vshrl.u32 %v1383, 7
        %v1385 = vsub.s32 %v1382, %v1384
        %v1386 = vrot.slane %v1364, %v1385
        %v1388 = vunpack.c.l.s4 1966171168
        %v1389 = vunpack.c.0.s8 %v1388
        %v1390 = vlaneseq
        %v1391 = vshrl.u32 %v1390, 7
        %v1392 = vsub.s32 %v1389, %v1391
        %v1393 = vrot.slane %v1365, %v1392
        %v1394 = vcombine.low %v1372, %v1379
        %v1395 = vcombine.low %v1386, %v1393
        %v1397 = vunpack.c.l.s4 1966171168
        %v1398 = vunpack.c.0.s8 %v1397
        %v1399 = vlaneseq
        %v1400 = vshrl.u32 %v1399, 7
        %v1401 = vsub.s32 %v1398, %v1400
        %v1402 = vrot.slane %v1394, %v1401
        %v1404 = vunpack.c.l.s4 1966171168
        %v1405 = vunpack.c.0.s8 %v1404
        %v1406 = vlaneseq
        %v1407 = vshrl.u32 %v1406, 7
        %v1408 = vsub.s32 %v1405, %v1407
        %v1409 = vrot.slane %v1395, %v1408
        %v1410 = vcombine.low %v1402, %v1409
        %v1411 = vcombine.low %v817, %v821
        %v1412 = vcombine.low %v825, %v829
        %v1413 = vcombine.low %v833, %v837
        %v1414 = vcombine.low %v841, %v845
        %v1416 = vunpack.c.l.s4 1966171168
        %v1417 = vunpack.c.0.s8 %v1416
        %v1418 = vlaneseq
        %v1419 = vshrl.u32 %v1418, 7
        %v1420 = vsub.s32 %v1417, %v1419
        %v1421 = vrot.slane %v1411, %v1420
        %v1423 = vunpack.c.l.s4 1966171168
        %v1424 = vunpack.c.0.s8 %v1423
        %v1425 = vlaneseq
        %v1426 = vshrl.u32 %v1425, 7
        %v1427 = vsub.s32 %v1424, %v1426
        %v1428 = vrot.slane %v1412, %v1427
        %v1430 = vunpack.c.l.s4 1966171168
        %v1431 = vunpack.c.0.s8 %v1430
        %v1432 = vlaneseq
        %v1433 = vshrl.u32 %v1432, 7
        %v1434 = vsub.s32 %v1431, %v1433
        %v1435 = vrot.slane %v1413, %v1434
        %v1437 = vunpack.c.l.s4 1966171168
        %v1438 = vunpack.c.0.s8 %v1437
        %v1439 = vlaneseq
        %v1440 = vshrl.u32 %v1439, 7
        %v1441 = vsub.s32 %v1438, %v1440
        %v1442 = vrot.slane %v1414, %v1441
        %v1443 = vcombine.low %v1421, %v1428
        %v1444 = vcombine.low %v1435, %v1442
        %v1446 = vunpack.c.l.s4 1966171168
        %v1447 = vunpack.c.0.s8 %v1446
        %v1448 = vlaneseq
        %v1449 = vshrl.u32 %v1448, 7
        %v1450 = vsub.s32 %v1447, %v1449
        %v1451 = vrot.slane %v1443, %v1450
        %v1453 = vunpack.c.l.s4 1966171168
        %v1454 = vunpack.c.0.s8 %v1453
        %v1455 = vlaneseq
        %v1456 = vshrl.u32 %v1455, 7
        %v1457 = vsub.s32 %v1454, %v1456
        %v1458 = vrot.slane %v1444, %v1457
        %v1459 = vcombine.low %v1451, %v1458
        %v1460 = vcombine.low %v849, %v853
        %v1461 = vcombine.low %v857, %v861
        %v1462 = vcombine.low %v865, %v869
        %v1463 = vcombine.low %v873, %v877
        %v1465 = vunpack.c.l.s4 1966171168
        %v1466 = vunpack.c.0.s8 %v1465
        %v1467 = vlaneseq
        %v1468 = vshrl.u32 %v1467, 7
        %v1469 = vsub.s32 %v1466, %v1468
        %v1470 = vrot.slane %v1460, %v1469
        %v1472 = vunpack.c.l.s4 1966171168
        %v1473 = vunpack.c.0.s8 %v1472
        %v1474 = vlaneseq
        %v1475 = vshrl.u32 %v1474, 7
        %v1476 = vsub.s32 %v1473, %v1475
        %v1477 = vrot.slane %v1461, %v1476
        %v1479 = vunpack.c.l.s4 1966171168
        %v1480 = vunpack.c.0.s8 %v1479
        %v1481 = vlaneseq
        %v1482 = vshrl.u32 %v1481, 7
        %v1483 = vsub.s32 %v1480, %v1482
        %v1484 = vrot.slane %v1462, %v1483
        %v1486 = vunpack.c.l.s4 1966171168
        %v1487 = vunpack.c.0.s8 %v1486
        %v1488 = vlaneseq
        %v1489 = vshrl.u32 %v1488, 7
        %v1490 = vsub.s32 %v1487, %v1489
        %v1491 = vrot.slane %v1463, %v1490
        %v1492 = vcombine.low %v1470, %v1477
        %v1493 = vcombine.low %v1484, %v1491
        %v1495 = vunpack.c.l.s4 1966171168
        %v1496 = vunpack.c.0.s8 %v1495
        %v1497 = vlaneseq
        %v1498 = vshrl.u32 %v1497, 7
        %v1499 = vsub.s32 %v1496, %v1498
        %v1500 = vrot.slane %v1492, %v1499
        %v1502 = vunpack.c.l.s4 1966171168
        %v1503 = vunpack.c.0.s8 %v1502
        %v1504 = vlaneseq
        %v1505 = vshrl.u32 %v1504, 7
        %v1506 = vsub.s32 %v1503, %v1505
        %v1507 = vrot.slane %v1493, %v1506
        %v1508 = vcombine.low %v1500, %v1507
        %v1509 = vcombine.low %v881, %v885
        %v1510 = vcombine.low %v889, %v893
        %v1511 = vcombine.low %v897, %v901
        %v1512 = vcombine.low %v905, %v909
        %v1514 = vunpack.c.l.s4 1966171168
        %v1515 = vunpack.c.0.s8 %v1514
        %v1516 = vlaneseq
        %v1517 = vshrl.u32 %v1516, 7
        %v1518 = vsub.s32 %v1515, %v1517
        %v1519 = vrot.slane %v1509, %v1518
        %v1521 = vunpack.c.l.s4 1966171168
        %v1522 = vunpack.c.0.s8 %v1521
        %v1523 = vlaneseq
        %v1524 = vshrl.u32 %v1523, 7
        %v1525 = vsub.s32 %v1522, %v1524
        %v1526 = vrot.slane %v1510, %v1525
        %v1528 = vunpack.c.l.s4 1966171168
        %v1529 = vunpack.c.0.s8 %v1528
        %v1530 = vlaneseq
        %v1531 = vshrl.u32 %v1530, 7
        %v1532 = vsub.s32 %v1529, %v1531
        %v1533 = vrot.slane %v1511, %v1532
        %v1535 = vunpack.c.l.s4 1966171168
        %v1536 = vunpack.c.0.s8 %v1535
        %v1537 = vlaneseq
        %v1538 = vshrl.u32 %v1537, 7
        %v1539 = vsub.s32 %v1536, %v1538
        %v1540 = vrot.slane %v1512, %v1539
        %v1541 = vcombine.low %v1519, %v1526
        %v1542 = vcombine.low %v1533, %v1540
        %v1544 = vunpack.c.l.s4 1966171168
        %v1545 = vunpack.c.0.s8 %v1544
        %v1546 = vlaneseq
        %v1547 = vshrl.u32 %v1546, 7
        %v1548 = vsub.s32 %v1545, %v1547
        %v1549 = vrot.slane %v1541, %v1548
        %v1551 = vunpack.c.l.s4 1966171168
        %v1552 = vunpack.c.0.s8 %v1551
        %v1553 = vlaneseq
        %v1554 = vshrl.u32 %v1553, 7
        %v1555 = vsub.s32 %v1552, %v1554
        %v1556 = vrot.slane %v1542, %v1555
        %v1557 = vcombine.low %v1549, %v1556
        %v1558 = vcombine.low %v913, %v917
        %v1559 = vcombine.low %v921, %v925
        %v1560 = vcombine.low %v929, %v933
        %v1561 = vcombine.low %v937, %v941
        %v1563 = vunpack.c.l.s4 1966171168
        %v1564 = vunpack.c.0.s8 %v1563
        %v1565 = vlaneseq
        %v1566 = vshrl.u32 %v1565, 7
        %v1567 = vsub.s32 %v1564, %v1566
        %v1568 = vrot.slane %v1558, %v1567
        %v1570 = vunpack.c.l.s4 1966171168
        %v1571 = vunpack.c.0.s8 %v1570
        %v1572 = vlaneseq
        %v1573 = vshrl.u32 %v1572, 7
        %v1574 = vsub.s32 %v1571, %v1573
        %v1575 = vrot.slane %v1559, %v1574
        %v1577 = vunpack.c.l.s4 1966171168
        %v1578 = vunpack.c.0.s8 %v1577
        %v1579 = vlaneseq
        %v1580 = vshrl.u32 %v1579, 7
        %v1581 = vsub.s32 %v1578, %v1580
        %v1582 = vrot.slane %v1560, %v1581
        %v1584 = vunpack.c.l.s4 1966171168
        %v1585 = vunpack.c.0.s8 %v1584
        %v1586 = vlaneseq
        %v1587 = vshrl.u32 %v1586, 7
        %v1588 = vsub.s32 %v1585, %v1587
        %v1589 = vrot.slane %v1561, %v1588
        %v1590 = vcombine.low %v1568, %v1575
        %v1591 = vcombine.low %v1582, %v1589
        %v1593 = vunpack.c.l.s4 1966171168
        %v1594 = vunpack.c.0.s8 %v1593
        %v1595 = vlaneseq
        %v1596 = vshrl.u32 %v1595, 7
        %v1597 = vsub.s32 %v1594, %v1596
        %v1598 = vrot.slane %v1590, %v1597
        %v1600 = vunpack.c.l.s4 1966171168
        %v1601 = vunpack.c.0.s8 %v1600
        %v1602 = vlaneseq
        %v1603 = vshrl.u32 %v1602, 7
        %v1604 = vsub.s32 %v1601, %v1603
        %v1605 = vrot.slane %v1591, %v1604
        %v1606 = vcombine.low %v1598, %v1605
        %v1607 = vcombine.low %v945, %v949
        %v1608 = vcombine.low %v953, %v957
        %v1609 = vcombine.low %v961, %v965
        %v1610 = vcombine.low %v969, %v973
        %v1612 = vunpack.c.l.s4 1966171168
        %v1613 = vunpack.c.0.s8 %v1612
        %v1614 = vlaneseq
        %v1615 = vshrl.u32 %v1614, 7
        %v1616 = vsub.s32 %v1613, %v1615
        %v1617 = vrot.slane %v1607, %v1616
        %v1619 = vunpack.c.l.s4 1966171168
        %v1620 = vunpack.c.0.s8 %v1619
        %v1621 = vlaneseq
        %v1622 = vshrl.u32 %v1621, 7
        %v1623 = vsub.s32 %v1620, %v1622
        %v1624 = vrot.slane %v1608, %v1623
        %v1626 = vunpack.c.l.s4 1966171168
        %v1627 = vunpack.c.0.s8 %v1626
        %v1628 = vlaneseq
        %v1629 = vshrl.u32 %v1628, 7
        %v1630 = vsub.s32 %v1627, %v1629
        %v1631 = vrot.slane %v1609, %v1630
        %v1633 = vunpack.c.l.s4 1966171168
        %v1634 = vunpack.c.0.s8 %v1633
        %v1635 = vlaneseq
        %v1636 = vshrl.u32 %v1635, 7
        %v1637 = vsub.s32 %v1634, %v1636
        %v1638 = vrot.slane %v1610, %v1637
        %v1639 = vcombine.low %v1617, %v1624
        %v1640 = vcombine.low %v1631, %v1638
        %v1642 = vunpack.c.l.s4 1966171168
        %v1643 = vunpack.c.0.s8 %v1642
        %v1644 = vlaneseq
        %v1645 = vshrl.u32 %v1644, 7
        %v1646 = vsub.s32 %v1643, %v1645
        %v1647 = vrot.slane %v1639, %v1646
        %v1649 = vunpack.c.l.s4 1966171168
        %v1650 = vunpack.c.0.s8 %v1649
        %v1651 = vlaneseq
        %v1652 = vshrl.u32 %v1651, 7
        %v1653 = vsub.s32 %v1650, %v1652
        %v1654 = vrot.slane %v1640, %v1653
        %v1655 = vcombine.low %v1647, %v1654
        %v1656 = vcombine.low %v977, %v981
        %v1657 = vcombine.low %v985, %v989
        %v1658 = vcombine.low %v993, %v997
        %v1659 = vcombine.low %v1001, %v1005
        %v1661 = vunpack.c.l.s4 1966171168
        %v1662 = vunpack.c.0.s8 %v1661
        %v1663 = vlaneseq
        %v1664 = vshrl.u32 %v1663, 7
        %v1665 = vsub.s32 %v1662, %v1664
        %v1666 = vrot.slane %v1656, %v1665
        %v1668 = vunpack.c.l.s4 1966171168
        %v1669 = vunpack.c.0.s8 %v1668
        %v1670 = vlaneseq
        %v1671 = vshrl.u32 %v1670, 7
        %v1672 = vsub.s32 %v1669, %v1671
        %v1673 = vrot.slane %v1657, %v1672
        %v1675 = vunpack.c.l.s4 1966171168
        %v1676 = vunpack.c.0.s8 %v1675
        %v1677 = vlaneseq
        %v1678 = vshrl.u32 %v1677, 7
        %v1679 = vsub.s32 %v1676, %v1678
        %v1680 = vrot.slane %v1658, %v1679
        %v1682 = vunpack.c.l.s4 1966171168
        %v1683 = vunpack.c.0.s8 %v1682
        %v1684 = vlaneseq
        %v1685 = vshrl.u32 %v1684, 7
        %v1686 = vsub.s32 %v1683, %v1685
        %v1687 = vrot.slane %v1659, %v1686
        %v1688 = vcombine.low %v1666, %v1673
        %v1689 = vcombine.low %v1680, %v1687
        %v1691 = vunpack.c.l.s4 1966171168
        %v1692 = vunpack.c.0.s8 %v1691
        %v1693 = vlaneseq
        %v1694 = vshrl.u32 %v1693, 7
        %v1695 = vsub.s32 %v1692, %v1694
        %v1696 = vrot.slane %v1688, %v1695
        %v1698 = vunpack.c.l.s4 1966171168
        %v1699 = vunpack.c.0.s8 %v1698
        %v1700 = vlaneseq
        %v1701 = vshrl.u32 %v1700, 7
        %v1702 = vsub.s32 %v1699, %v1701
        %v1703 = vrot.slane %v1689, %v1702
        %v1704 = vcombine.low %v1696, %v1703
        %v1705 = vcombine.low %v1009, %v1013
        %v1706 = vcombine.low %v1017, %v1021
        %v1707 = vcombine.low %v1025, %v1029
        %v1708 = vcombine.low %v1033, %v1037
        %v1710 = vunpack.c.l.s4 1966171168
        %v1711 = vunpack.c.0.s8 %v1710
        %v1712 = vlaneseq
        %v1713 = vshrl.u32 %v1712, 7
        %v1714 = vsub.s32 %v1711, %v1713
        %v1715 = vrot.slane %v1705, %v1714
        %v1717 = vunpack.c.l.s4 1966171168
        %v1718 = vunpack.c.0.s8 %v1717
        %v1719 = vlaneseq
        %v1720 = vshrl.u32 %v1719, 7
        %v1721 = vsub.s32 %v1718, %v1720
        %v1722 = vrot.slane %v1706, %v1721
        %v1724 = vunpack.c.l.s4 1966171168
        %v1725 = vunpack.c.0.s8 %v1724
        %v1726 = vlaneseq
        %v1727 = vshrl.u32 %v1726, 7
        %v1728 = vsub.s32 %v1725, %v1727
        %v1729 = vrot.slane %v1707, %v1728
        %v1731 = vunpack.c.l.s4 1966171168
        %v1732 = vunpack.c.0.s8 %v1731
        %v1733 = vlaneseq
        %v1734 = vshrl.u32 %v1733, 7
        %v1735 = vsub.s32 %v1732, %v1734
        %v1736 = vrot.slane %v1708, %v1735
        %v1737 = vcombine.low %v1715, %v1722
        %v1738 = vcombine.low %v1729, %v1736
        %v1740 = vunpack.c.l.s4 1966171168
        %v1741 = vunpack.c.0.s8 %v1740
        %v1742 = vlaneseq
        %v1743 = vshrl.u32 %v1742, 7
        %v1744 = vsub.s32 %v1741, %v1743
        %v1745 = vrot.slane %v1737, %v1744
        %v1747 = vunpack.c.l.s4 1966171168
        %v1748 = vunpack.c.0.s8 %v1747
        %v1749 = vlaneseq
        %v1750 = vshrl.u32 %v1749, 7
        %v1751 = vsub.s32 %v1748, %v1750
        %v1752 = vrot.slane %v1738, %v1751
        %v1753 = vcombine.low %v1745, %v1752
        %v1754 = vcombine.low %v1041, %v1045
        %v1755 = vcombine.low %v1049, %v1053
        %v1756 = vcombine.low %v1057, %v1061
        %v1757 = vcombine.low %v1065, %v1069
        %v1759 = vunpack.c.l.s4 1966171168
        %v1760 = vunpack.c.0.s8 %v1759
        %v1761 = vlaneseq
        %v1762 = vshrl.u32 %v1761, 7
        %v1763 = vsub.s32 %v1760, %v1762
        %v1764 = vrot.slane %v1754, %v1763
        %v1766 = vunpack.c.l.s4 1966171168
        %v1767 = vunpack.c.0.s8 %v1766
        %v1768 = vlaneseq
        %v1769 = vshrl.u32 %v1768, 7
        %v1770 = vsub.s32 %v1767, %v1769
        %v1771 = vrot.slane %v1755, %v1770
        %v1773 = vunpack.c.l.s4 1966171168
        %v1774 = vunpack.c.0.s8 %v1773
        %v1775 = vlaneseq
        %v1776 = vshrl.u32 %v1775, 7
        %v1777 = vsub.s32 %v1774, %v1776
        %v1778 = vrot.slane %v1756, %v1777
        %v1780 = vunpack.c.l.s4 1966171168
        %v1781 = vunpack.c.0.s8 %v1780
        %v1782 = vlaneseq
        %v1783 = vshrl.u32 %v1782, 7
        %v1784 = vsub.s32 %v1781, %v1783
        %v1785 = vrot.slane %v1757, %v1784
        %v1786 = vcombine.low %v1764, %v1771
        %v1787 = vcombine.low %v1778, %v1785
        %v1789 = vunpack.c.l.s4 1966171168
        %v1790 = vunpack.c.0.s8 %v1789
        %v1791 = vlaneseq
        %v1792 = vshrl.u32 %v1791, 7
        %v1793 = vsub.s32 %v1790, %v1792
        %v1794 = vrot.slane %v1786, %v1793
        %v1796 = vunpack.c.l.s4 1966171168
        %v1797 = vunpack.c.0.s8 %v1796
        %v1798 = vlaneseq
        %v1799 = vshrl.u32 %v1798, 7
        %v1800 = vsub.s32 %v1797, %v1799
        %v1801 = vrot.slane %v1787, %v1800
        %v1802 = vcombine.low %v1794, %v1801
        %v1803 = vcombine.low %v1073, %v1077
        %v1804 = vcombine.low %v1081, %v1085
        %v1805 = vcombine.low %v1089, %v1093
        %v1806 = vcombine.low %v1097, %v1101
        %v1808 = vunpack.c.l.s4 1966171168
        %v1809 = vunpack.c.0.s8 %v1808
        %v1810 = vlaneseq
        %v1811 = vshrl.u32 %v1810, 7
        %v1812 = vsub.s32 %v1809, %v1811
        %v1813 = vrot.slane %v1803, %v1812
        %v1815 = vunpack.c.l.s4 1966171168
        %v1816 = vunpack.c.0.s8 %v1815
        %v1817 = vlaneseq
        %v1818 = vshrl.u32 %v1817, 7
        %v1819 = vsub.s32 %v1816, %v1818
        %v1820 = vrot.slane %v1804, %v1819
        %v1822 = vunpack.c.l.s4 1966171168
        %v1823 = vunpack.c.0.s8 %v1822
        %v1824 = vlaneseq
        %v1825 = vshrl.u32 %v1824, 7
        %v1826 = vsub.s32 %v1823, %v1825
        %v1827 = vrot.slane %v1805, %v1826
        %v1829 = vunpack.c.l.s4 1966171168
        %v1830 = vunpack.c.0.s8 %v1829
        %v1831 = vlaneseq
        %v1832 = vshrl.u32 %v1831, 7
        %v1833 = vsub.s32 %v1830, %v1832
        %v1834 = vrot.slane %v1806, %v1833
        %v1835 = vcombine.low %v1813, %v1820
        %v1836 = vcombine.low %v1827, %v1834
        %v1838 = vunpack.c.l.s4 1966171168
        %v1839 = vunpack.c.0.s8 %v1838
        %v1840 = vlaneseq
        %v1841 = vshrl.u32 %v1840, 7
        %v1842 = vsub.s32 %v1839, %v1841
        %v1843 = vrot.slane %v1835, %v1842
        %v1845 = vunpack.c.l.s4 1966171168
        %v1846 = vunpack.c.0.s8 %v1845
        %v1847 = vlaneseq
        %v1848 = vshrl.u32 %v1847, 7
        %v1849 = vsub.s32 %v1846, %v1848
        %v1850 = vrot.slane %v1836, %v1849
        %v1851 = vcombine.low %v1843, %v1850
        %v1852 = vcombine.low %v1105, %v1109
        %v1853 = vcombine.low %v1113, %v1117
        %v1854 = vcombine.low %v1121, %v1125
        %v1855 = vcombine.low %v1129, %v1133
        %v1857 = vunpack.c.l.s4 1966171168
        %v1858 = vunpack.c.0.s8 %v1857
        %v1859 = vlaneseq
        %v1860 = vshrl.u32 %v1859, 7
        %v1861 = vsub.s32 %v1858, %v1860
        %v1862 = vrot.slane %v1852, %v1861
        %v1864 = vunpack.c.l.s4 1966171168
        %v1865 = vunpack.c.0.s8 %v1864
        %v1866 = vlaneseq
        %v1867 = vshrl.u32 %v1866, 7
        %v1868 = vsub.s32 %v1865, %v1867
        %v1869 = vrot.slane %v1853, %v1868
        %v1871 = vunpack.c.l.s4 1966171168
        %v1872 = vunpack.c.0.s8 %v1871
        %v1873 = vlaneseq
        %v1874 = vshrl.u32 %v1873, 7
        %v1875 = vsub.s32 %v1872, %v1874
        %v1876 = vrot.slane %v1854, %v1875
        %v1878 = vunpack.c.l.s4 1966171168
        %v1879 = vunpack.c.0.s8 %v1878
        %v1880 = vlaneseq
        %v1881 = vshrl.u32 %v1880, 7
        %v1882 = vsub.s32 %v1879, %v1881
        %v1883 = vrot.slane %v1855, %v1882
        %v1884 = vcombine.low %v1862, %v1869
        %v1885 = vcombine.low %v1876, %v1883
        %v1887 = vunpack.c.l.s4 1966171168
        %v1888 = vunpack.c.0.s8 %v1887
        %v1889 = vlaneseq
        %v1890 = vshrl.u32 %v1889, 7
        %v1891 = vsub.s32 %v1888, %v1890
        %v1892 = vrot.slane %v1884, %v1891
        %v1894 = vunpack.c.l.s4 1966171168
        %v1895 = vunpack.c.0.s8 %v1894
        %v1896 = vlaneseq
        %v1897 = vshrl.u32 %v1896, 7
        %v1898 = vsub.s32 %v1895, %v1897
        %v1899 = vrot.slane %v1885, %v1898
        %v1900 = vcombine.low %v1892, %v1899
        %v1901 = vcombine.low %v1137, %v1141
        %v1902 = vcombine.low %v1145, %v1149
        %v1903 = vcombine.low %v1153, %v1157
        %v1904 = vcombine.low %v1161, %v1165
        %v1906 = vunpack.c.l.s4 1966171168
        %v1907 = vunpack.c.0.s8 %v1906
        %v1908 = vlaneseq
        %v1909 = vshrl.u32 %v1908, 7
        %v1910 = vsub.s32 %v1907, %v1909
        %v1911 = vrot.slane %v1901, %v1910
        %v1913 = vunpack.c.l.s4 1966171168
        %v1914 = vunpack.c.0.s8 %v1913
        %v1915 = vlaneseq
        %v1916 = vshrl.u32 %v1915, 7
        %v1917 = vsub.s32 %v1914, %v1916
        %v1918 = vrot.slane %v1902, %v1917
        %v1920 = vunpack.c.l.s4 1966171168
        %v1921 = vunpack.c.0.s8 %v1920
        %v1922 = vlaneseq
        %v1923 = vshrl.u32 %v1922, 7
        %v1924 = vsub.s32 %v1921, %v1923
        %v1925 = vrot.slane %v1903, %v1924
        %v1927 = vunpack.c.l.s4 1966171168
        %v1928 = vunpack.c.0.s8 %v1927
        %v1929 = vlaneseq
        %v1930 = vshrl.u32 %v1929, 7
        %v1931 = vsub.s32 %v1928, %v1930
        %v1932 = vrot.slane %v1904, %v1931
        %v1933 = vcombine.low %v1911, %v1918
        %v1934 = vcombine.low %v1925, %v1932
        %v1936 = vunpack.c.l.s4 1966171168
        %v1937 = vunpack.c.0.s8 %v1936
        %v1938 = vlaneseq
        %v1939 = vshrl.u32 %v1938, 7
        %v1940 = vsub.s32 %v1937, %v1939
        %v1941 = vrot.slane %v1933, %v1940
        %v1943 = vunpack.c.l.s4 1966171168
        %v1944 = vunpack.c.0.s8 %v1943
        %v1945 = vlaneseq
        %v1946 = vshrl.u32 %v1945, 7
        %v1947 = vsub.s32 %v1944, %v1946
        %v1948 = vrot.slane %v1934, %v1947
        %v1949 = vcombine.low %v1941, %v1948
        %1950 = vset.pattern.permute.xlu0 0
        %1951 = vperm.xlu0 %1950, %v1214
        %v1952 = vpop.permute.xlu0 %1951
        %1953 = vset.pattern.permute.xlu0 0
        %1954 = vperm.xlu0 %1953, %v1263
        %v1955 = vpop.permute.xlu0 %1954
        %1956 = vset.pattern.permute.xlu0 0
        %1957 = vperm.xlu0 %1956, %v1312
        %v1958 = vpop.permute.xlu0 %1957
        %1959 = vset.pattern.permute.xlu0 0
        %1960 = vperm.xlu0 %1959, %v1361
        %v1961 = vpop.permute.xlu0 %1960
        %1962 = vset.pattern.permute.xlu0 0
        %1963 = vperm.xlu0 %1962, %v1410
        %v1964 = vpop.permute.xlu0 %1963
        %1965 = vset.pattern.permute.xlu0 0
        %1966 = vperm.xlu0 %1965, %v1459
        %v1967 = vpop.permute.xlu0 %1966
        %1968 = vset.pattern.permute.xlu0 0
        %1969 = vperm.xlu0 %1968, %v1508
        %v1970 = vpop.permute.xlu0 %1969
        %1971 = vset.pattern.permute.xlu0 0
        %1972 = vperm.xlu0 %1971, %v1557
        %v1973 = vpop.permute.xlu0 %1972
        %1974 = vset.pattern.permute.xlu0 0
        %1975 = vperm.xlu0 %1974, %v1606
        %v1976 = vpop.permute.xlu0 %1975
        %1977 = vset.pattern.permute.xlu0 0
        %1978 = vperm.xlu0 %1977, %v1655
        %v1979 = vpop.permute.xlu0 %1978
        %1980 = vset.pattern.permute.xlu0 0
        %1981 = vperm.xlu0 %1980, %v1704
        %v1982 = vpop.permute.xlu0 %1981
        %1983 = vset.pattern.permute.xlu0 0
        %1984 = vperm.xlu0 %1983, %v1753
        %v1985 = vpop.permute.xlu0 %1984
        %1986 = vset.pattern.permute.xlu0 0
        %1987 = vperm.xlu0 %1986, %v1802
        %v1988 = vpop.permute.xlu0 %1987
        %1989 = vset.pattern.permute.xlu0 0
        %1990 = vperm.xlu0 %1989, %v1851
        %v1991 = vpop.permute.xlu0 %1990
        %1992 = vset.pattern.permute.xlu0 0
        %1993 = vperm.xlu0 %1992, %v1900
        %v1994 = vpop.permute.xlu0 %1993
        %1995 = vset.pattern.permute.xlu0 0
        %1996 = vperm.xlu0 %1995, %v1949
        %v1997 = vpop.permute.xlu0 %1996
        %v1998 = vlaneseq
        %v1999 = vand.u32 %v1998, 127
        %v2000 = vlaneseq
        %v2001 = vshrl.u32 %v2000, 7
        %v2002 = vsub.s32 %v1999, %v2001
        %v2003 = vrot.slane %v1952, %v2002
        %v2004 = vadd.s32 %v1999, 4294967288
        %v2005 = vlaneseq
        %v2006 = vshrl.u32 %v2005, 7
        %v2007 = vsub.s32 %v2004, %v2006
        %v2008 = vrot.slane %v1955, %v2007
        %vm2009 = vcmask 130112
        %v2010 = vsel %vm2009, %v2008, %v2003
        %v2011 = vadd.s32 %v1999, 4294967280
        %v2012 = vlaneseq
        %v2013 = vshrl.u32 %v2012, 7
        %v2014 = vsub.s32 %v2011, %v2013
        %v2015 = vrot.slane %v1958, %v2014
        %vm2016 = vcmask 195712
        %v2017 = vsel %vm2016, %v2015, %v2010
        %v2018 = vadd.s32 %v1999, 4294967272
        %v2019 = vlaneseq
        %v2020 = vshrl.u32 %v2019, 7
        %v2021 = vsub.s32 %v2018, %v2020
        %v2022 = vrot.slane %v1961, %v2021
        %vm2023 = vcmask 261312
        %v2024 = vsel %vm2023, %v2022, %v2017
        %v2025 = vadd.s32 %v1999, 4294967264
        %v2026 = vlaneseq
        %v2027 = vshrl.u32 %v2026, 7
        %v2028 = vsub.s32 %v2025, %v2027
        %v2029 = vrot.slane %v1964, %v2028
        %vm2030 = vcmask 326912
        %v2031 = vsel %vm2030, %v2029, %v2024
        %v2032 = vadd.s32 %v1999, 4294967256
        %v2033 = vlaneseq
        %v2034 = vshrl.u32 %v2033, 7
        %v2035 = vsub.s32 %v2032, %v2034
        %v2036 = vrot.slane %v1967, %v2035
        %vm2037 = vcmask 392512
        %v2038 = vsel %vm2037, %v2036, %v2031
        %v2039 = vadd.s32 %v1999, 4294967248
        %v2040 = vlaneseq
        %v2041 = vshrl.u32 %v2040, 7
        %v2042 = vsub.s32 %v2039, %v2041
        %v2043 = vrot.slane %v1970, %v2042
        %vm2044 = vcmask 458112
        %v2045 = vsel %vm2044, %v2043, %v2038
        %v2046 = vadd.s32 %v1999, 4294967240
        %v2047 = vlaneseq
        %v2048 = vshrl.u32 %v2047, 7
        %v2049 = vsub.s32 %v2046, %v2048
        %v2050 = vrot.slane %v1973, %v2049
        %vm2051 = vcmask 523712
        %v2052 = vsel %vm2051, %v2050, %v2045
        %v2053 = vadd.s32 %v1999, 4294967232
        %v2054 = vlaneseq
        %v2055 = vshrl.u32 %v2054, 7
        %v2056 = vsub.s32 %v2053, %v2055
        %v2057 = vrot.slane %v1976, %v2056
        %vm2058 = vcmask 589312
        %v2059 = vsel %vm2058, %v2057, %v2052
        %v2060 = vadd.s32 %v1999, 4294967224
        %v2061 = vlaneseq
        %v2062 = vshrl.u32 %v2061, 7
        %v2063 = vsub.s32 %v2060, %v2062
        %v2064 = vrot.slane %v1979, %v2063
        %vm2065 = vcmask 654912
        %v2066 = vsel %vm2065, %v2064, %v2059
        %v2067 = vadd.s32 %v1999, 4294967216
        %v2068 = vlaneseq
        %v2069 = vshrl.u32 %v2068, 7
        %v2070 = vsub.s32 %v2067, %v2069
        %v2071 = vrot.slane %v1982, %v2070
        %vm2072 = vcmask 720512
        %v2073 = vsel %vm2072, %v2071, %v2066
        %v2074 = vadd.s32 %v1999, 4294967208
        %v2075 = vlaneseq
        %v2076 = vshrl.u32 %v2075, 7
        %v2077 = vsub.s32 %v2074, %v2076
        %v2078 = vrot.slane %v1985, %v2077
        %vm2079 = vcmask 786112
        %v2080 = vsel %vm2079, %v2078, %v2073
        %v2081 = vadd.s32 %v1999, 4294967200
        %v2082 = vlaneseq
        %v2083 = vshrl.u32 %v2082, 7
        %v2084 = vsub.s32 %v2081, %v2083
        %v2085 = vrot.slane %v1988, %v2084
        %vm2086 = vcmask 851712
        %v2087 = vsel %vm2086, %v2085, %v2080
        %v2088 = vadd.s32 %v1999, 4294967192
        %v2089 = vlaneseq
        %v2090 = vshrl.u32 %v2089, 7
        %v2091 = vsub.s32 %v2088, %v2090
        %v2092 = vrot.slane %v1991, %v2091
        %vm2093 = vcmask 917312
        %v2094 = vsel %vm2093, %v2092, %v2087
        %v2095 = vadd.s32 %v1999, 4294967184
        %v2096 = vlaneseq
        %v2097 = vshrl.u32 %v2096, 7
        %v2098 = vsub.s32 %v2095, %v2097
        %v2099 = vrot.slane %v1994, %v2098
        %vm2100 = vcmask 982912
        %v2101 = vsel %vm2100, %v2099, %v2094
        %v2102 = vadd.s32 %v1999, 4294967176
        %v2103 = vlaneseq
        %v2104 = vshrl.u32 %v2103, 7
        %v2105 = vsub.s32 %v2102, %v2104
        %v2106 = vrot.slane %v1997, %v2105
        %vm2107 = vcmask 1048512
        %v2108 = vsel %vm2107, %v2106, %v2101
        %v2110 = vunpack.c.l.s4 1966171168
        %v2111 = vunpack.c.0.s8 %v2110
        %v2112 = vlaneseq
        %v2113 = vshrl.u32 %v2112, 7
        %v2114 = vsub.s32 %v2111, %v2113
        %v2115 = vrot.slane %v2108, %v2114
        %v2117 = vunpack.c.l.s4 1966171168
        %v2118 = vunpack.c.0.s8 %v2117
        %v2119 = vlaneseq
        %v2120 = vshrl.u32 %v2119, 7
        %v2121 = vsub.s32 %v2118, %v2120
        %v2122 = vrot.slane %v2115, %v2121
        %v2124 = vadd.f32 %v605, %v2122
        %2125 = vst [vmem:[%s260] sm:$0x1] %v2124
        %s2126 = sand.u32 %s123, 1
        %s2127 = sand.u32 %s123, 1
        %s2128 = smul.addr %s2127, 128
        %s2129 = scalar_lea.vmem [#allocation2], %s2128
        %p2130 = scmp.lt.s32.totalorder %s21, 1
        %s2131 = scalar_select %p2130, %s21, 1
        %p2132 = scmp.lt.s32.totalorder %s22, 0
        %s2133 = scalar_select %p2132, %s22, 0
        %s2134 = sadd.s32 %s2133, %s2131
        %s2135 = scalar_lea.vmem %s4, %s2134
        // Predicated region
        $region37: #{ranzcr_forward.1} parent=31 // pred_check
          %p2136 = pneg %p133
        $region38: #{ranzcr_forward.1} parent=31 // pred_check_branch
          %2138 = sbr.rel (%p2136) target = $region40
        $region39: #{ranzcr_forward.1} parent=31 // pred_region
          %s2139 = smul.u32 %s22, 2
          %s2140 = sadd.s32 %s2139, %s23
          %s2141 = smul.addr %s21, 32
          %s2142 = sadd.s32 %s2140, %s2141
          %s2143 = smul.addr %s2142, 8
          %s2144 = scalar_lea.vmem %s3, %s2143
          // Predicated region
          $region41: #{ranzcr_forward.1} parent=39 // pred_check
            _
          $region42: #{ranzcr_forward.1} parent=39 // pred_check_branch
            %2146 = sbr.rel (0) target = $region44
          $region43: #{ranzcr_forward.1} parent=39 // pred_region
            // Predicated region
            $region45: #{ranzcr_forward.1} parent=43 // pred_check
              _
            $region46: #{ranzcr_forward.1} parent=43 // pred_check_branch
              %2148 = sbr.rel (0) target = $region48
            $region47: #{ranzcr_forward.1} parent=43 // pred_region
              // Predicated region
              $region60: #{ranzcr_forward.1} parent=47 // pred_check
                _
              $region61: #{ranzcr_forward.1} parent=47 // pred_check_branch
                %2194 = sbr.rel (0) target = $region63
              $region62: #{ranzcr_forward.1} parent=47 // pred_region
                loop: start=0, step=1, limit=1
                $region64: #{ranzcr_forward.1} parent=62 // loop_pre_header
                  _
                $region65: #{ranzcr_forward.1} parent=62 // loop_header
                  %s2196 = sphi 0, %s2200
                  %p2197 = scmp.ge.s32.totalorder %s2196, 1
                  %s2201 = sphi %s2129, %s2129
                  %s2202 = sphi %s2144, %s2144
                $region66: #{ranzcr_forward.1} parent=62 // loop_header_branch
                  %2199 = sbr.rel (%p2197) target = $region70
                $region67: #{ranzcr_forward.1} parent=62 // loop_body
                  %v2203 = vld [vmem:[%s2201] sm:$0xff]
                  %2204 = vst [vmem:[%s2202] sm:$0xff] %v2203
                  %v2205 = vld [vmem:[%s2201 + $0x8] sm:$0xff]
                  %2206 = vst [vmem:[%s2202 + $0x10] sm:$0xff] %v2205
                  %v2207 = vld [vmem:[%s2201 + $0x10] sm:$0xff]
                  %2208 = vst [vmem:[%s2202 + $0x20] sm:$0xff] %v2207
                  %v2209 = vld [vmem:[%s2201 + $0x18] sm:$0xff]
                  %2210 = vst [vmem:[%s2202 + $0x30] sm:$0xff] %v2209
                  %v2211 = vld [vmem:[%s2201 + $0x20] sm:$0xff]
                  %2212 = vst [vmem:[%s2202 + $0x40] sm:$0xff] %v2211
                  %v2213 = vld [vmem:[%s2201 + $0x28] sm:$0xff]
                  %2214 = vst [vmem:[%s2202 + $0x50] sm:$0xff] %v2213
                  %v2215 = vld [vmem:[%s2201 + $0x30] sm:$0xff]
                  %2216 = vst [vmem:[%s2202 + $0x60] sm:$0xff] %v2215
                  %v2217 = vld [vmem:[%s2201 + $0x38] sm:$0xff]
                  %2218 = vst [vmem:[%s2202 + $0x70] sm:$0xff] %v2217
                  %v2219 = vld [vmem:[%s2201 + $0x40] sm:$0xff]
                  %2220 = vst [vmem:[%s2202 + $0x80] sm:$0xff] %v2219
                  %v2221 = vld [vmem:[%s2201 + $0x48] sm:$0xff]
                  %2222 = vst [vmem:[%s2202 + $0x90] sm:$0xff] %v2221
                  %v2223 = vld [vmem:[%s2201 + $0x50] sm:$0xff]
                  %2224 = vst [vmem:[%s2202 + $0xa0] sm:$0xff] %v2223
                  %v2225 = vld [vmem:[%s2201 + $0x58] sm:$0xff]
                  %2226 = vst [vmem:[%s2202 + $0xb0] sm:$0xff] %v2225
                  %v2227 = vld [vmem:[%s2201 + $0x60] sm:$0xff]
                  %2228 = vst [vmem:[%s2202 + $0xc0] sm:$0xff] %v2227
                  %v2229 = vld [vmem:[%s2201 + $0x68] sm:$0xff]
                  %2230 = vst [vmem:[%s2202 + $0xd0] sm:$0xff] %v2229
                  %v2231 = vld [vmem:[%s2201 + $0x70] sm:$0xff]
                  %2232 = vst [vmem:[%s2202 + $0xe0] sm:$0xff] %v2231
                  %v2233 = vld [vmem:[%s2201 + $0x78] sm:$0xff]
                  %2234 = vst [vmem:[%s2202 + $0xf0] sm:$0xff] %v2233
                $region68: #{ranzcr_forward.1} parent=62 // loop_footer
                  %s2200 = sadd.s32 1, %s2196
                $region69: #{ranzcr_forward.1} parent=62 // loop_footer_branch
                  %2195 = sbr.rel target = $region65
                $region70: #{ranzcr_forward.1} parent=62 // loop_exit
                  _
              $region63: #{ranzcr_forward.1} parent=47 // pred_fallthru
                _
              // Predicated region
              $region71: #{ranzcr_forward.1} parent=47 // pred_check
                _
              $region72: #{ranzcr_forward.1} parent=47 // pred_check_branch
                %2236 = sbr.rel target = $region74
              $region73: #{ranzcr_forward.1} parent=47 // pred_region
                _
              $region74: #{ranzcr_forward.1} parent=47 // pred_fallthru
                _
            $region48: #{ranzcr_forward.1} parent=43 // pred_fallthru
              _
            // Predicated region
            $region49: #{ranzcr_forward.1} parent=43 // pred_check
              _
            $region50: #{ranzcr_forward.1} parent=43 // pred_check_branch
              %2150 = sbr.rel target = $region52
            $region51: #{ranzcr_forward.1} parent=43 // pred_region
              %s2152 = ssub.s32 256, 1
              loop: start=0, step=1, limit=1
              $region53: #{ranzcr_forward.1} parent=51 // loop_pre_header
                _
              $region54: #{ranzcr_forward.1} parent=51 // loop_header
                %s2154 = sphi 0, %s2158
                %p2155 = scmp.ge.s32.totalorder %s2154, 1
                %s2159 = sphi %s2129, %s2129
                %s2160 = sphi %s2144, %s2144
              $region55: #{ranzcr_forward.1} parent=51 // loop_header_branch
                %2157 = sbr.rel (%p2155) target = $region59
              $region56: #{ranzcr_forward.1} parent=51 // loop_body
                %v2161 = vld [vmem:[%s2159] sm:%s2152]
                %2162 = vst [vmem:[%s2160] sm:%s2152] %v2161
                %v2163 = vld [vmem:[%s2159 + $0x8] sm:%s2152]
                %2164 = vst [vmem:[%s2160 + $0x10] sm:%s2152] %v2163
                %v2165 = vld [vmem:[%s2159 + $0x10] sm:%s2152]
                %2166 = vst [vmem:[%s2160 + $0x20] sm:%s2152] %v2165
                %v2167 = vld [vmem:[%s2159 + $0x18] sm:%s2152]
                %2168 = vst [vmem:[%s2160 + $0x30] sm:%s2152] %v2167
                %v2169 = vld [vmem:[%s2159 + $0x20] sm:%s2152]
                %2170 = vst [vmem:[%s2160 + $0x40] sm:%s2152] %v2169
                %v2171 = vld [vmem:[%s2159 + $0x28] sm:%s2152]
                %2172 = vst [vmem:[%s2160 + $0x50] sm:%s2152] %v2171
                %v2173 = vld [vmem:[%s2159 + $0x30] sm:%s2152]
                %2174 = vst [vmem:[%s2160 + $0x60] sm:%s2152] %v2173
                %v2175 = vld [vmem:[%s2159 + $0x38] sm:%s2152]
                %2176 = vst [vmem:[%s2160 + $0x70] sm:%s2152] %v2175
                %v2177 = vld [vmem:[%s2159 + $0x40] sm:%s2152]
                %2178 = vst [vmem:[%s2160 + $0x80] sm:%s2152] %v2177
                %v2179 = vld [vmem:[%s2159 + $0x48] sm:%s2152]
                %2180 = vst [vmem:[%s2160 + $0x90] sm:%s2152] %v2179
                %v2181 = vld [vmem:[%s2159 + $0x50] sm:%s2152]
                %2182 = vst [vmem:[%s2160 + $0xa0] sm:%s2152] %v2181
                %v2183 = vld [vmem:[%s2159 + $0x58] sm:%s2152]
                %2184 = vst [vmem:[%s2160 + $0xb0] sm:%s2152] %v2183
                %v2185 = vld [vmem:[%s2159 + $0x60] sm:%s2152]
                %2186 = vst [vmem:[%s2160 + $0xc0] sm:%s2152] %v2185
                %v2187 = vld [vmem:[%s2159 + $0x68] sm:%s2152]
                %2188 = vst [vmem:[%s2160 + $0xd0] sm:%s2152] %v2187
                %v2189 = vld [vmem:[%s2159 + $0x70] sm:%s2152]
                %2190 = vst [vmem:[%s2160 + $0xe0] sm:%s2152] %v2189
                %v2191 = vld [vmem:[%s2159 + $0x78] sm:%s2152]
                %2192 = vst [vmem:[%s2160 + $0xf0] sm:%s2152] %v2191
              $region57: #{ranzcr_forward.1} parent=51 // loop_footer
                %s2158 = sadd.s32 1, %s2154
              $region58: #{ranzcr_forward.1} parent=51 // loop_footer_branch
                %2153 = sbr.rel target = $region54
              $region59: #{ranzcr_forward.1} parent=51 // loop_exit
                _
            $region52: #{ranzcr_forward.1} parent=43 // pred_fallthru
              _
          $region44: #{ranzcr_forward.1} parent=39 // pred_fallthru
            _
          %2237 = vnop
        $region40: #{ranzcr_forward.1} parent=31 // pred_fallthru
          _
        // Predicated region
        $region75: #{ranzcr_forward.1} parent=31 // pred_check
          %p2238 = pneg %p161
        $region76: #{ranzcr_forward.1} parent=31 // pred_check_branch
          %2240 = sbr.rel (%p2238) target = $region78
        $region77: #{ranzcr_forward.1} parent=31 // pred_region
          _
        $region78: #{ranzcr_forward.1} parent=31 // pred_fallthru
          _
      $region32: #{ranzcr_forward.1} parent=5 // pred_fallthru
        _
      %p2241 = scmp.le.s32.totalorder 2, %s11
      // Predicated region
      $region79: #{ranzcr_forward.1} parent=5 // pred_check
        %p2242 = pneg %p2241
      $region80: #{ranzcr_forward.1} parent=5 // pred_check_branch
        %2244 = sbr.rel (%p2242) target = $region82
      $region81: #{ranzcr_forward.1} parent=5 // pred_region
        %s2245 = ssub.s32 %s11, 2
        // Predicated region
        $region83: #{ranzcr_forward.1} parent=81 // pred_check
          %p2246 = pneg %p139
        $region84: #{ranzcr_forward.1} parent=81 // pred_check_branch
          %2248 = sbr.rel (%p2246) target = $region86
        $region85: #{ranzcr_forward.1} parent=81 // pred_region
          %s2249 = sand.u32 %s124, 1
          %s2250 = sand.u32 %s124, 1
          %s2251 = smul.addr %s2250, 128
          %s2252 = scalar_lea.vmem [#allocation2], %s2251
        $region86: #{ranzcr_forward.1} parent=81 // pred_fallthru
          _
        // Predicated region
        $region87: #{ranzcr_forward.1} parent=81 // pred_check
          %p2253 = pneg %p167
        $region88: #{ranzcr_forward.1} parent=81 // pred_check_branch
          %2255 = sbr.rel (%p2253) target = $region90
        $region89: #{ranzcr_forward.1} parent=81 // pred_region
          %p2256 = scmp.lt.s32.totalorder %s24, 1
          %s2257 = scalar_select %p2256, %s24, 1
          %p2258 = scmp.lt.s32.totalorder %s25, 0
          %s2259 = scalar_select %p2258, %s25, 0
          %s2260 = sadd.s32 %s2259, %s2257
          %s2261 = scalar_lea.vmem %s4, %s2260
        $region90: #{ranzcr_forward.1} parent=81 // pred_fallthru
          _
      $region82: #{ranzcr_forward.1} parent=5 // pred_fallthru
        _
    $region6: #{ranzcr_forward.1} parent=1 // loop_footer
      %s15 = sadd.s32 1, %s11
    $region7: #{ranzcr_forward.1} parent=1 // loop_footer_branch
      %10 = sbr.rel target = $region3
    $region8: #{ranzcr_forward.1} parent=1 // loop_exit
      _

</llo_original>
